<compile_context>
chip_gen: v7x
topology: tpu7x:2x2x1
jax: 0.10.0
libtpu: 0.0.40
codegen_flags: <defaults>
</compile_context>

<pallas_src>
import jax
import jax.numpy as jnp
from jax.experimental import pallas as pl
from jax.experimental.pallas import tpu as pltpu


# ----------------------------------------------------------------------------
# 1-D operator construction (plain-JAX glue, computed once in the wrapper)
# ----------------------------------------------------------------------------
def _bilinear_matrix(out_size: int, in_size: int) -> jnp.ndarray:
    """1-D bilinear interpolation matrix (out_size, in_size) matching
    PyTorch F.interpolate(mode='bilinear', align_corners=False)."""
    dst = jnp.arange(out_size, dtype=jnp.float32)
    src = (dst + 0.5) * (in_size / out_size) - 0.5
    src = jnp.maximum(src, 0.0)                       # PyTorch clamps negatives
    i0 = jnp.minimum(jnp.floor(src).astype(jnp.int32), in_size - 1)
    i1 = jnp.minimum(i0 + 1, in_size - 1)
    frac = src - i0.astype(jnp.float32)
    rows = jnp.arange(out_size)
    A = jnp.zeros((out_size, in_size), jnp.float32)
    A = A.at[rows, i0].add(1.0 - frac)
    A = A.at[rows, i1].add(frac)
    return A


def _avgpool_matrix(size: int) -> jnp.ndarray:
    """1-D 4x average-pool matrix (size, size // 4), entries 0.25."""
    h = jnp.arange(size)
    i = jnp.arange(size // 4)
    return (h[:, None] // 4 == i[None, :]).astype(jnp.float32) * 0.25


def _pick_bn(n: int, cap: int = 8) -> int:
    """Largest divisor of n that is <= cap (batch block per grid step)."""
    for bn in range(min(n, cap), 0, -1):
        if n % bn == 0:
            return bn
    return 1


# ----------------------------------------------------------------------------
# Pallas kernel: one batch block (BN samples) per grid step
# ----------------------------------------------------------------------------
def _spatial_attention_kernel(x_ref, w1t_ref, w2t_ref, w3t_ref,
                              pht_ref, pw_ref, ah_ref, awt_ref,
                              out_ref, att_ref):
    f32 = jnp.float32
    x = x_ref[...].astype(f32)                         # (BN, C, H, W)
    BN, C, H, W = x.shape
    Hp = pht_ref.shape[0]
    Wp = pw_ref.shape[1]

    def bmm(lhs3, rhs2):
        """(BN, M, K) @ (K, N) -> (BN, M, N) as a canonical batched matmul."""
        rhs3 = jnp.broadcast_to(rhs2.astype(f32), (lhs3.shape[0],) + rhs2.shape)
        return jax.lax.dot_general(
            lhs3, rhs3, (((2,), (1,)), ((0,), (0,))),
            preferred_element_type=f32)

    def bmm_l(lhs2, rhs3):
        """(M, K) @ (BN, K, N) -> (BN, M, N) as a canonical batched matmul."""
        lhs3 = jnp.broadcast_to(lhs2.astype(f32), (rhs3.shape[0],) + lhs2.shape)
        return jax.lax.dot_general(
            lhs3, rhs3, (((2,), (1,)), ((0,), (0,))),
            preferred_element_type=f32)

    # ---- channel mean: torch.mean(x, 1) --------------------------------
    xm = x[:, 0]
    for c in range(1, C):
        xm = xm + x[:, c]
    xm = xm * (1.0 / C)                                # (BN, H, W)

    # ---- separable 4x4 average pool:  PhT @ xm @ Pw --------------------
    t = bmm(xm, pw_ref[...])                           # (BN, H, Wp)
    pooled = bmm_l(pht_ref[...], t)                    # (BN, Hp, Wp)

    # ---- MLP: Linear -> ReLU -> Linear -> ReLU -> Linear -> Sigmoid ----
    # Layer 1 folds the row-major flatten (d = i*Wp + j, matching
    # torch.flatten) into Hp small matmuls against row-blocks of W1^T.
    h1 = None
    for i in range(Hp):
        w1_blk = w1t_ref[i * Wp:(i + 1) * Wp, :]       # (Wp, 256)
        term = bmm(pooled[:, i:i + 1, :], w1_blk)      # (BN, 1, 256)
        h1 = term if h1 is None else h1 + term
    h1 = jnp.maximum(h1, 0.0)                          # (BN, 1, 256)

    h2 = jnp.maximum(bmm(h1, w2t_ref[...]), 0.0)       # (BN, 1, D)
    g = jax.nn.sigmoid(bmm(h2, w3t_ref[...]))          # (BN, 1, D)

    # ---- separable bilinear upsample:  Ah @ s @ AwT ---------------------
    # H-direction: accumulate Hp rank-1 (outer-product) terms on the VPU,
    # keeping the flat gate layout (avoids an in-kernel unflatten reshape).
    ah = ah_ref[...].astype(f32)                       # (H, Hp)
    t2 = None
    for i in range(Hp):
        col = ah[:, i:i + 1][None, :, :]               # (1, H, 1)
        gi = g[:, :, i * Wp:(i + 1) * Wp]              # (BN, 1, Wp)
        term = col * gi                                # (BN, H, Wp)
        t2 = term if t2 is None else t2 + term
    # W-direction on the MXU:
    up = bmm(t2, awt_ref[...])                         # (BN, H, W)

    # ---- outputs ---------------------------------------------------------
    up4 = up[:, None, :, :]                            # (BN, 1, H, W)
    att_ref[...] = up4.astype(att_ref.dtype)           # single copy
    out_ref[...] = (x * up4).astype(out_ref.dtype)     # (BN, C, H, W)


# ----------------------------------------------------------------------------
# Wrapper
# ----------------------------------------------------------------------------
def spatial_attention(x, w1, w2, w3, *, param_dtype=jnp.float32, bn_cap=8):
    """x: (N, 3, H, W) f32.  PyTorch Linear weights (out, in):
       w1: (256, D), w2: (D, 256), w3: (D, D) with D = (H//4)*(W//4).
       Returns (x3, x2), shapes (N, 3, H, W)."""
    N, C, H, W = x.shape
    assert C == 3, "module semantics require 3 input channels"
    assert H % 4 == 0 and W % 4 == 0, "H and W must be divisible by 4"
    Hp, Wp = H // 4, W // 4
    D = Hp * Wp
    assert w1.shape == (256, D) and w2.shape == (D, 256) and w3.shape == (D, D)

    BN = _pick_bn(N, bn_cap)

    # Separable 1-D operators (KBs instead of a dense (HW, D) kron).
    pht = _avgpool_matrix(H).T.astype(param_dtype)        # (Hp, H)
    pw = _avgpool_matrix(W).astype(param_dtype)           # (W, Wp)
    ah = _bilinear_matrix(H, Hp).astype(param_dtype)      # (H, Hp)
    awt = _bilinear_matrix(W, Wp).T.astype(param_dtype)   # (Wp, W)

    w1t = w1.T.astype(param_dtype)                        # (D, 256)
    w2t = w2.T.astype(param_dtype)                        # (256, D)
    w3t = w3.T.astype(param_dtype)                        # (D, D)
    xf = x.astype(jnp.float32)

    out, att = pl.pallas_call(
        _spatial_attention_kernel,
        out_shape=[jax.ShapeDtypeStruct((N, C, H, W), jnp.float32),
                   jax.ShapeDtypeStruct((N, 1, H, W), jnp.float32)],
        grid=(N // BN,),
        in_specs=[
            pl.BlockSpec((BN, C, H, W), lambda g: (g, 0, 0, 0)),  # x batch block
            pl.BlockSpec((D, 256), lambda g: (0, 0)),             # W1^T
            pl.BlockSpec((256, D), lambda g: (0, 0)),             # W2^T
            pl.BlockSpec((D, D), lambda g: (0, 0)),               # W3^T
            pl.BlockSpec((Hp, H), lambda g: (0, 0)),              # Ph^T (pool, rows)
            pl.BlockSpec((W, Wp), lambda g: (0, 0)),              # Pw   (pool, cols)
            pl.BlockSpec((H, Hp), lambda g: (0, 0)),              # Ah   (upsample, rows)
            pl.BlockSpec((Wp, W), lambda g: (0, 0)),              # Aw^T (upsample, cols)
        ],
        out_specs=[
            pl.BlockSpec((BN, C, H, W), lambda g: (g, 0, 0, 0)),  # x3
            pl.BlockSpec((BN, 1, H, W), lambda g: (g, 0, 0, 0)),  # gate (1 channel)
        ],
        compiler_params=pltpu.CompilerParams(
            dimension_semantics=("parallel",),
            vmem_limit_bytes=32 * 1024 * 1024,
        ),
    )(xf, w1t, w2t, w3t, pht, pw, ah, awt)

    # 3-channel stack of the PyTorch module: done outside the kernel so the
    # kernel only writes one copy of the attention map.
    x2 = jnp.broadcast_to(att, (N, 3, H, W))
    return out, x2


# ----------------------------------------------------------------------------
# Pure-JAX reference (same math, no Pallas) for the correctness check
# ----------------------------------------------------------------------------
def spatial_attention_ref(x, w1, w2, w3):
    N, C, H, W = x.shape
    Hp, Wp = H // 4, W // 4
    xm = jnp.mean(x, axis=1)                                    # (N, H, W)
    pooled = xm.reshape(N, Hp, 4, Wp, 4).mean(axis=(2, 4))      # (N, Hp, Wp)
    v = pooled.reshape(N, Hp * Wp)
    h1 = jnp.maximum(v @ w1.T, 0.0)
    h2 = jnp.maximum(h1 @ w2.T, 0.0)
    h3 = jax.nn.sigmoid(h2 @ w3.T)
    s = h3.reshape(N, Hp, Wp)
    Ah = _bilinear_matrix(H, Hp)
    Aw = _bilinear_matrix(W, Wp)
    up = jnp.einsum("hi,nij,wj->nhw", Ah, s, Aw)                # (N, H, W)
    x2 = jnp.broadcast_to(up[:, None], (N, 3, H, W))
    x3 = x * x2
    return x3, x2


if __name__ == "__main__":
    base_key = jax.random.PRNGKey(0)

    def run_case(case_idx, N, C, H, W):
        D = (H // 4) * (W // 4)
        key = jax.random.fold_in(base_key, case_idx)
        kx, k1, k2, k3 = jax.random.split(key, 4)
        x = jax.random.normal(kx, (N, C, H, W), jnp.float32)
        # deterministic synthetic weights (PyTorch Linear layout: (out, in))
        w1 = jax.random.normal(k1, (256, D), jnp.float32) / jnp.sqrt(float(D))
        w2 = jax.random.normal(k2, (D, 256), jnp.float32) / jnp.sqrt(256.0)
        w3 = jax.random.normal(k3, (D, D), jnp.float32) / jnp.sqrt(float(D))

        x3, x2 = spatial_attention(x, w1, w2, w3)
        jax.block_until_ready((x3, x2))

        x3_ref, x2_ref = spatial_attention_ref(x, w1, w2, w3)
        # 1e-3 tolerance leaves headroom for MXU f32 matmul precision.
        assert jnp.allclose(x3, x3_ref, atol=1e-3, rtol=1e-3), \
            f"x3 mismatch at {(N, C, H, W)}"
        assert jnp.allclose(x2, x2_ref, atol=1e-3, rtol=1e-3), \
            f"x2 mismatch at {(N, C, H, W)}"

    run_case(0, 2, 3, 16, 16)   # primary small case
    run_case(1, 4, 3, 32, 48)   # non-square case: validates the separable
                                # pool / bilinear operators and flatten order
    print("KERNEL_OK")
</pallas_src>

<mosaic_0001>
module attributes {stable_mosaic.version = 11 : i64} {
  func.func @_spatial_attention_kernel(%arg0: i32, %arg1: memref<2x3x16x16xf32, #tpu.memory_space<vmem>>, %arg2: memref<16x256xf32, #tpu.memory_space<vmem>>, %arg3: memref<256x16xf32, #tpu.memory_space<vmem>>, %arg4: memref<16x16xf32, #tpu.memory_space<vmem>>, %arg5: memref<4x16xf32, #tpu.memory_space<vmem>>, %arg6: memref<16x4xf32, #tpu.memory_space<vmem>>, %arg7: memref<16x4xf32, #tpu.memory_space<vmem>>, %arg8: memref<4x16xf32, #tpu.memory_space<vmem>>, %arg9: memref<2x3x16x16xf32, #tpu.memory_space<vmem>>, %arg10: memref<2x1x16x16xf32, #tpu.memory_space<vmem>>) attributes {dimension_semantics = [#tpu.dimension_semantics<parallel>], iteration_bounds = array<i64: 1>, scalar_prefetch = 0 : i64, scratch_operands = 0 : i64, tpu.core_type = #tpu.core_type<tc>, window_params = [{transform_indices = @transform_0, window_bounds = array<i64: 2, 3, 16, 16>}, {pipeline_mode = #tpu.pipeline_mode<synchronous>, transform_indices = @transform_1, window_bounds = array<i64: 16, 256>}, {pipeline_mode = #tpu.pipeline_mode<synchronous>, transform_indices = @transform_2, window_bounds = array<i64: 256, 16>}, {pipeline_mode = #tpu.pipeline_mode<synchronous>, transform_indices = @transform_3, window_bounds = array<i64: 16, 16>}, {pipeline_mode = #tpu.pipeline_mode<synchronous>, transform_indices = @transform_4, window_bounds = array<i64: 4, 16>}, {pipeline_mode = #tpu.pipeline_mode<synchronous>, transform_indices = @transform_5, window_bounds = array<i64: 16, 4>}, {pipeline_mode = #tpu.pipeline_mode<synchronous>, transform_indices = @transform_6, window_bounds = array<i64: 16, 4>}, {pipeline_mode = #tpu.pipeline_mode<synchronous>, transform_indices = @transform_7, window_bounds = array<i64: 4, 16>}, {transform_indices = @transform_8, window_bounds = array<i64: 2, 3, 16, 16>}, {transform_indices = @transform_9, window_bounds = array<i64: 2, 1, 16, 16>}]} {
    %c0 = arith.constant 0 : index
    %c0_0 = arith.constant 0 : index
    %c0_1 = arith.constant 0 : index
    %c0_2 = arith.constant 0 : index
    %0 = vector.load %arg1[%c0, %c0_0, %c0_1, %c0_2] : memref<2x3x16x16xf32, #tpu.memory_space<vmem>>, vector<2x3x16x16xf32>
    %1 = vector.extract_strided_slice %0 {offsets = [0, 0, 0, 0], sizes = [2, 1, 16, 16], strides = [1, 1, 1, 1]} : vector<2x3x16x16xf32> to vector<2x1x16x16xf32>
    %2 = vector.shape_cast %1 : vector<2x1x16x16xf32> to vector<2x16x16xf32>
    %3 = vector.extract_strided_slice %0 {offsets = [0, 1, 0, 0], sizes = [2, 1, 16, 16], strides = [1, 1, 1, 1]} : vector<2x3x16x16xf32> to vector<2x1x16x16xf32>
    %4 = vector.shape_cast %3 : vector<2x1x16x16xf32> to vector<2x16x16xf32>
    %5 = arith.addf %2, %4 : vector<2x16x16xf32>
    %6 = vector.extract_strided_slice %0 {offsets = [0, 2, 0, 0], sizes = [2, 1, 16, 16], strides = [1, 1, 1, 1]} : vector<2x3x16x16xf32> to vector<2x1x16x16xf32>
    %7 = vector.shape_cast %6 : vector<2x1x16x16xf32> to vector<2x16x16xf32>
    %8 = arith.addf %5, %7 : vector<2x16x16xf32>
    %cst = arith.constant 0.333333343 : f32
    %9 = vector.broadcast %cst : f32 to vector<2x16x16xf32>
    %10 = arith.mulf %8, %9 : vector<2x16x16xf32>
    %c0_3 = arith.constant 0 : index
    %c0_4 = arith.constant 0 : index
    %11 = vector.load %arg6[%c0_3, %c0_4] : memref<16x4xf32, #tpu.memory_space<vmem>>, vector<16x4xf32>
    %12 = vector.shape_cast %11 : vector<16x4xf32> to vector<1x16x4xf32>
    %13 = vector.broadcast %12 : vector<1x16x4xf32> to vector<2x16x4xf32>
    %cst_5 = arith.constant dense<0.000000e+00> : vector<2x16x4xf32>
    %14 = tpu.matmul %10, %13, %cst_5 {dimension_numbers = #tpu.dot_dimension_numbers<[2], [1], [1], [2], [0, 0, 0, 1, 1, 2], [0], [0]>} : vector<2x16x16xf32>, vector<2x16x4xf32>, vector<2x16x4xf32> -> vector<2x16x4xf32>
    %c0_6 = arith.constant 0 : index
    %c0_7 = arith.constant 0 : index
    %15 = vector.load %arg5[%c0_6, %c0_7] : memref<4x16xf32, #tpu.memory_space<vmem>>, vector<4x16xf32>
    %16 = vector.shape_cast %15 : vector<4x16xf32> to vector<1x4x16xf32>
    %17 = vector.broadcast %16 : vector<1x4x16xf32> to vector<2x4x16xf32>
    %cst_8 = arith.constant dense<0.000000e+00> : vector<2x4x4xf32>
    %18 = tpu.matmul %17, %14, %cst_8 {dimension_numbers = #tpu.dot_dimension_numbers<[2], [1], [1], [2], [0, 0, 0, 1, 1, 2], [0], [0]>} : vector<2x4x16xf32>, vector<2x16x4xf32>, vector<2x4x4xf32> -> vector<2x4x4xf32>
    %c0_9 = arith.constant 0 : index
    %c0_10 = arith.constant 0 : index
    %19 = vector.load %arg2[%c0_9, %c0_10] : memref<16x256xf32, #tpu.memory_space<vmem>>, vector<4x256xf32>
    %20 = vector.extract_strided_slice %18 {offsets = [0, 0, 0], sizes = [2, 1, 4], strides = [1, 1, 1]} : vector<2x4x4xf32> to vector<2x1x4xf32>
    %21 = vector.shape_cast %19 : vector<4x256xf32> to vector<1x4x256xf32>
    %22 = vector.broadcast %21 : vector<1x4x256xf32> to vector<2x4x256xf32>
    %cst_11 = arith.constant dense<0.000000e+00> : vector<2x1x256xf32>
    %23 = tpu.matmul %20, %22, %cst_11 {dimension_numbers = #tpu.dot_dimension_numbers<[2], [1], [1], [2], [0, 0, 0, 1, 1, 2], [0], [0]>} : vector<2x1x4xf32>, vector<2x4x256xf32>, vector<2x1x256xf32> -> vector<2x1x256xf32>
    %c4 = arith.constant 4 : index
    %c0_12 = arith.constant 0 : index
    %24 = vector.load %arg2[%c4, %c0_12] : memref<16x256xf32, #tpu.memory_space<vmem>>, vector<4x256xf32>
    %25 = vector.extract_strided_slice %18 {offsets = [0, 1, 0], sizes = [2, 1, 4], strides = [1, 1, 1]} : vector<2x4x4xf32> to vector<2x1x4xf32>
    %26 = vector.shape_cast %24 : vector<4x256xf32> to vector<1x4x256xf32>
    %27 = vector.broadcast %26 : vector<1x4x256xf32> to vector<2x4x256xf32>
    %cst_13 = arith.constant dense<0.000000e+00> : vector<2x1x256xf32>
    %28 = tpu.matmul %25, %27, %cst_13 {dimension_numbers = #tpu.dot_dimension_numbers<[2], [1], [1], [2], [0, 0, 0, 1, 1, 2], [0], [0]>} : vector<2x1x4xf32>, vector<2x4x256xf32>, vector<2x1x256xf32> -> vector<2x1x256xf32>
    %29 = arith.addf %23, %28 : vector<2x1x256xf32>
    %c8 = arith.constant 8 : index
    %c0_14 = arith.constant 0 : index
    %30 = vector.load %arg2[%c8, %c0_14] : memref<16x256xf32, #tpu.memory_space<vmem>>, vector<4x256xf32>
    %31 = vector.extract_strided_slice %18 {offsets = [0, 2, 0], sizes = [2, 1, 4], strides = [1, 1, 1]} : vector<2x4x4xf32> to vector<2x1x4xf32>
    %32 = vector.shape_cast %30 : vector<4x256xf32> to vector<1x4x256xf32>
    %33 = vector.broadcast %32 : vector<1x4x256xf32> to vector<2x4x256xf32>
    %cst_15 = arith.constant dense<0.000000e+00> : vector<2x1x256xf32>
    %34 = tpu.matmul %31, %33, %cst_15 {dimension_numbers = #tpu.dot_dimension_numbers<[2], [1], [1], [2], [0, 0, 0, 1, 1, 2], [0], [0]>} : vector<2x1x4xf32>, vector<2x4x256xf32>, vector<2x1x256xf32> -> vector<2x1x256xf32>
    %35 = arith.addf %29, %34 : vector<2x1x256xf32>
    %c12 = arith.constant 12 : index
    %c0_16 = arith.constant 0 : index
    %36 = vector.load %arg2[%c12, %c0_16] : memref<16x256xf32, #tpu.memory_space<vmem>>, vector<4x256xf32>
    %37 = vector.extract_strided_slice %18 {offsets = [0, 3, 0], sizes = [2, 1, 4], strides = [1, 1, 1]} : vector<2x4x4xf32> to vector<2x1x4xf32>
    %38 = vector.shape_cast %36 : vector<4x256xf32> to vector<1x4x256xf32>
    %39 = vector.broadcast %38 : vector<1x4x256xf32> to vector<2x4x256xf32>
    %cst_17 = arith.constant dense<0.000000e+00> : vector<2x1x256xf32>
    %40 = tpu.matmul %37, %39, %cst_17 {dimension_numbers = #tpu.dot_dimension_numbers<[2], [1], [1], [2], [0, 0, 0, 1, 1, 2], [0], [0]>} : vector<2x1x4xf32>, vector<2x4x256xf32>, vector<2x1x256xf32> -> vector<2x1x256xf32>
    %41 = arith.addf %35, %40 : vector<2x1x256xf32>
    %cst_18 = arith.constant 0.000000e+00 : f32
    %42 = vector.broadcast %cst_18 : f32 to vector<2x1x256xf32>
    %43 = arith.maximumf %41, %42 : vector<2x1x256xf32>
    %c0_19 = arith.constant 0 : index
    %c0_20 = arith.constant 0 : index
    %44 = vector.load %arg3[%c0_19, %c0_20] : memref<256x16xf32, #tpu.memory_space<vmem>>, vector<256x16xf32>
    %45 = vector.shape_cast %44 : vector<256x16xf32> to vector<1x256x16xf32>
    %46 = vector.broadcast %45 : vector<1x256x16xf32> to vector<2x256x16xf32>
    %cst_21 = arith.constant dense<0.000000e+00> : vector<2x1x16xf32>
    %47 = tpu.matmul %43, %46, %cst_21 {dimension_numbers = #tpu.dot_dimension_numbers<[2], [1], [1], [2], [0, 0, 0, 1, 1, 2], [0], [0]>} : vector<2x1x256xf32>, vector<2x256x16xf32>, vector<2x1x16xf32> -> vector<2x1x16xf32>
    %cst_22 = arith.constant 0.000000e+00 : f32
    %48 = vector.broadcast %cst_22 : f32 to vector<2x1x16xf32>
    %49 = arith.maximumf %47, %48 : vector<2x1x16xf32>
    %c0_23 = arith.constant 0 : index
    %c0_24 = arith.constant 0 : index
    %50 = vector.load %arg4[%c0_23, %c0_24] : memref<16x16xf32, #tpu.memory_space<vmem>>, vector<16x16xf32>
    %51 = vector.shape_cast %50 : vector<16x16xf32> to vector<1x16x16xf32>
    %52 = vector.broadcast %51 : vector<1x16x16xf32> to vector<2x16x16xf32>
    %cst_25 = arith.constant dense<0.000000e+00> : vector<2x1x16xf32>
    %53 = tpu.matmul %49, %52, %cst_25 {dimension_numbers = #tpu.dot_dimension_numbers<[2], [1], [1], [2], [0, 0, 0, 1, 1, 2], [0], [0]>} : vector<2x1x16xf32>, vector<2x16x16xf32>, vector<2x1x16xf32> -> vector<2x1x16xf32>
    %54 = arith.negf %53 : vector<2x1x16xf32>
    %55 = math.exp %54 : vector<2x1x16xf32>
    %cst_26 = arith.constant 1.000000e+00 : f32
    %56 = vector.broadcast %cst_26 : f32 to vector<2x1x16xf32>
    %57 = arith.addf %56, %55 : vector<2x1x16xf32>
    %58 = arith.divf %56, %57 : vector<2x1x16xf32>
    %c0_27 = arith.constant 0 : index
    %c0_28 = arith.constant 0 : index
    %59 = vector.load %arg7[%c0_27, %c0_28] : memref<16x4xf32, #tpu.memory_space<vmem>>, vector<16x4xf32>
    %60 = vector.extract_strided_slice %59 {offsets = [0, 0], sizes = [16, 1], strides = [1, 1]} : vector<16x4xf32> to vector<16x1xf32>
    %61 = vector.shape_cast %60 : vector<16x1xf32> to vector<1x16x1xf32>
    %62 = vector.extract_strided_slice %58 {offsets = [0, 0, 0], sizes = [2, 1, 4], strides = [1, 1, 1]} : vector<2x1x16xf32> to vector<2x1x4xf32>
    %63 = vector.broadcast %61 : vector<1x16x1xf32> to vector<2x16x4xf32>
    %64 = vector.broadcast %62 : vector<2x1x4xf32> to vector<2x16x4xf32>
    %65 = arith.mulf %63, %64 : vector<2x16x4xf32>
    %66 = vector.extract_strided_slice %59 {offsets = [0, 1], sizes = [16, 1], strides = [1, 1]} : vector<16x4xf32> to vector<16x1xf32>
    %67 = vector.shape_cast %66 : vector<16x1xf32> to vector<1x16x1xf32>
    %68 = vector.extract_strided_slice %58 {offsets = [0, 0, 4], sizes = [2, 1, 4], strides = [1, 1, 1]} : vector<2x1x16xf32> to vector<2x1x4xf32>
    %69 = vector.broadcast %67 : vector<1x16x1xf32> to vector<2x16x4xf32>
    %70 = vector.broadcast %68 : vector<2x1x4xf32> to vector<2x16x4xf32>
    %71 = arith.mulf %69, %70 : vector<2x16x4xf32>
    %72 = arith.addf %65, %71 : vector<2x16x4xf32>
    %73 = vector.extract_strided_slice %59 {offsets = [0, 2], sizes = [16, 1], strides = [1, 1]} : vector<16x4xf32> to vector<16x1xf32>
    %74 = vector.shape_cast %73 : vector<16x1xf32> to vector<1x16x1xf32>
    %75 = vector.extract_strided_slice %58 {offsets = [0, 0, 8], sizes = [2, 1, 4], strides = [1, 1, 1]} : vector<2x1x16xf32> to vector<2x1x4xf32>
    %76 = vector.broadcast %74 : vector<1x16x1xf32> to vector<2x16x4xf32>
    %77 = vector.broadcast %75 : vector<2x1x4xf32> to vector<2x16x4xf32>
    %78 = arith.mulf %76, %77 : vector<2x16x4xf32>
    %79 = arith.addf %72, %78 : vector<2x16x4xf32>
    %80 = vector.extract_strided_slice %59 {offsets = [0, 3], sizes = [16, 1], strides = [1, 1]} : vector<16x4xf32> to vector<16x1xf32>
    %81 = vector.shape_cast %80 : vector<16x1xf32> to vector<1x16x1xf32>
    %82 = vector.extract_strided_slice %58 {offsets = [0, 0, 12], sizes = [2, 1, 4], strides = [1, 1, 1]} : vector<2x1x16xf32> to vector<2x1x4xf32>
    %83 = vector.broadcast %81 : vector<1x16x1xf32> to vector<2x16x4xf32>
    %84 = vector.broadcast %82 : vector<2x1x4xf32> to vector<2x16x4xf32>
    %85 = arith.mulf %83, %84 : vector<2x16x4xf32>
    %86 = arith.addf %79, %85 : vector<2x16x4xf32>
    %c0_29 = arith.constant 0 : index
    %c0_30 = arith.constant 0 : index
    %87 = vector.load %arg8[%c0_29, %c0_30] : memref<4x16xf32, #tpu.memory_space<vmem>>, vector<4x16xf32>
    %88 = vector.shape_cast %87 : vector<4x16xf32> to vector<1x4x16xf32>
    %89 = vector.broadcast %88 : vector<1x4x16xf32> to vector<2x4x16xf32>
    %cst_31 = arith.constant dense<0.000000e+00> : vector<2x16x16xf32>
    %90 = tpu.matmul %86, %89, %cst_31 {dimension_numbers = #tpu.dot_dimension_numbers<[2], [1], [1], [2], [0, 0, 0, 1, 1, 2], [0], [0]>} : vector<2x16x4xf32>, vector<2x4x16xf32>, vector<2x16x16xf32> -> vector<2x16x16xf32>
    %91 = vector.shape_cast %90 : vector<2x16x16xf32> to vector<2x1x16x16xf32>
    %c0_32 = arith.constant 0 : index
    %c0_33 = arith.constant 0 : index
    %c0_34 = arith.constant 0 : index
    %c0_35 = arith.constant 0 : index
    %92 = vector.load %arg10[%c0_32, %c0_33, %c0_34, %c0_35] : memref<2x1x16x16xf32, #tpu.memory_space<vmem>>, vector<2x1x16x16xf32>
    tpu.vector_store %arg10[%c0_32, %c0_33, %c0_34, %c0_35], %91 {strides = array<i32>} : memref<2x1x16x16xf32, #tpu.memory_space<vmem>>, vector<2x1x16x16xf32>,
    %93 = vector.broadcast %91 : vector<2x1x16x16xf32> to vector<2x3x16x16xf32>
    %94 = arith.mulf %0, %93 : vector<2x3x16x16xf32>
    %c0_36 = arith.constant 0 : index
    %c0_37 = arith.constant 0 : index
    %c0_38 = arith.constant 0 : index
    %c0_39 = arith.constant 0 : index
    %95 = vector.load %arg9[%c0_36, %c0_37, %c0_38, %c0_39] : memref<2x3x16x16xf32, #tpu.memory_space<vmem>>, vector<2x3x16x16xf32>
    tpu.vector_store %arg9[%c0_36, %c0_37, %c0_38, %c0_39], %94 {strides = array<i32>} : memref<2x3x16x16xf32, #tpu.memory_space<vmem>>, vector<2x3x16x16xf32>,
    return
  }
  func.func @transform_0(%arg0: i32) -> (i32, i32, i32, i32) {
    %c0_i32 = arith.constant 0 : i32
    %c0_i32_0 = arith.constant 0 : i32
    %c0_i32_1 = arith.constant 0 : i32
    %c0_i32_2 = arith.constant 0 : i32
    return %arg0, %c0_i32, %c0_i32_0, %c0_i32_1 : i32, i32, i32, i32
  }
  func.func @transform_1(%arg0: i32) -> (i32, i32) {
    %c0_i32 = arith.constant 0 : i32
    %c0_i32_0 = arith.constant 0 : i32
    %c0_i32_1 = arith.constant 0 : i32
    return %c0_i32, %c0_i32_0 : i32, i32
  }
  func.func @transform_2(%arg0: i32) -> (i32, i32) {
    %c0_i32 = arith.constant 0 : i32
    %c0_i32_0 = arith.constant 0 : i32
    %c0_i32_1 = arith.constant 0 : i32
    return %c0_i32, %c0_i32_0 : i32, i32
  }
  func.func @transform_3(%arg0: i32) -> (i32, i32) {
    %c0_i32 = arith.constant 0 : i32
    %c0_i32_0 = arith.constant 0 : i32
    %c0_i32_1 = arith.constant 0 : i32
    return %c0_i32, %c0_i32_0 : i32, i32
  }
  func.func @transform_4(%arg0: i32) -> (i32, i32) {
    %c0_i32 = arith.constant 0 : i32
    %c0_i32_0 = arith.constant 0 : i32
    %c0_i32_1 = arith.constant 0 : i32
    return %c0_i32, %c0_i32_0 : i32, i32
  }
  func.func @transform_5(%arg0: i32) -> (i32, i32) {
    %c0_i32 = arith.constant 0 : i32
    %c0_i32_0 = arith.constant 0 : i32
    %c0_i32_1 = arith.constant 0 : i32
    return %c0_i32, %c0_i32_0 : i32, i32
  }
  func.func @transform_6(%arg0: i32) -> (i32, i32) {
    %c0_i32 = arith.constant 0 : i32
    %c0_i32_0 = arith.constant 0 : i32
    %c0_i32_1 = arith.constant 0 : i32
    return %c0_i32, %c0_i32_0 : i32, i32
  }
  func.func @transform_7(%arg0: i32) -> (i32, i32) {
    %c0_i32 = arith.constant 0 : i32
    %c0_i32_0 = arith.constant 0 : i32
    %c0_i32_1 = arith.constant 0 : i32
    return %c0_i32, %c0_i32_0 : i32, i32
  }
  func.func @transform_8(%arg0: i32) -> (i32, i32, i32, i32) {
    %c0_i32 = arith.constant 0 : i32
    %c0_i32_0 = arith.constant 0 : i32
    %c0_i32_1 = arith.constant 0 : i32
    %c0_i32_2 = arith.constant 0 : i32
    return %arg0, %c0_i32, %c0_i32_0, %c0_i32_1 : i32, i32, i32, i32
  }
  func.func @transform_9(%arg0: i32) -> (i32, i32, i32, i32) {
    %c0_i32 = arith.constant 0 : i32
    %c0_i32_0 = arith.constant 0 : i32
    %c0_i32_1 = arith.constant 0 : i32
    %c0_i32_2 = arith.constant 0 : i32
    return %arg0, %c0_i32, %c0_i32_0, %c0_i32_1 : i32, i32, i32, i32
  }
}

</mosaic_0001>

<llo_original>
// kernel: tpu_custom_call.1
$region0: #{tpu_custom_call.1}
  #allocation0 [shape = 'u32[]', space=smem, size = 0x4, offset = 0x4, fixed_abs, tag = 'smem constant byte address 0x4 - core index']
  #allocation1 [shape = 'u32[144,128]{1,0:T(1,128)}', space=vmem, size = 0x12000, scoped, tag = 'internal scratch']
  %s0 = inlined_call_operand.vmem [shape: f32[2,3,16,16], index: 0, kind: input, shape index: {}]
  %s1 = inlined_call_operand.vmem [shape: f32[16,256], index: 1, kind: input, shape index: {}]
  %s2 = inlined_call_operand.vmem [shape: f32[256,16], index: 2, kind: input, shape index: {}]
  %s3 = inlined_call_operand.vmem [shape: f32[16,16], index: 3, kind: input, shape index: {}]
  %s4 = inlined_call_operand.vmem [shape: f32[4,16], index: 4, kind: input, shape index: {}]
  %s5 = inlined_call_operand.vmem [shape: f32[16,4], index: 5, kind: input, shape index: {}]
  %s6 = inlined_call_operand.vmem [shape: f32[16,4], index: 6, kind: input, shape index: {}]
  %s7 = inlined_call_operand.vmem [shape: f32[4,16], index: 7, kind: input, shape index: {}]
  %s8 = inlined_call_operand.hbm [shape: f32[2,3,16,16], index: 8, kind: output, shape index: {0}]
  %s9 = inlined_call_operand.hbm [shape: f32[2,1,16,16], index: 9, kind: output, shape index: {1}]
  %10 = xla_tuple %s8, %s9
  %s11 = sld [smem:[#allocation0]]
  $region50: #{tpu_custom_call.1} parent=0
    _
  %s13 = ssub.s32 1, %s11
  %s14 = scalar_select 0, %s13, %s11
  $region1: #{tpu_custom_call.1} parent=0
    #allocation2 [shape = 'u8[49152]{0}', space=vmem, size = 0xc000, scoped, tag = 'output window, operand 0, single buffered']
    #allocation3 [shape = 's32[1]{0}', space=sflag, size = 0x4, scoped, tag = 'scoped memory for tpu_custom_call.1']
    #allocation4 [shape = 'u8[16384]{0}', space=vmem, size = 0x4000, scoped, tag = 'output window, operand 1, single buffered']
    #allocation5 [shape = 's32[1]{0}', space=sflag, size = 0x4, scoped, tag = 'scoped memory for tpu_custom_call.1']
    %15 = vsyncpa [#allocation3], 0
    %16 = vsyncpa [#allocation5], 0
    // Predicated region
    $region2: #{tpu_custom_call.1} parent=1 // pred_check
      _
    $region3: #{tpu_custom_call.1} parent=1 // pred_check_branch
      %18 = sbr.rel (0) target = $region5
    $region4: #{tpu_custom_call.1} parent=1 // pred_region
      _
    $region5: #{tpu_custom_call.1} parent=1 // pred_fallthru
      _
    // Predicated region
    $region6: #{tpu_custom_call.1} parent=1 // pred_check
      _
    $region7: #{tpu_custom_call.1} parent=1 // pred_check_branch
      %20 = sbr.rel (0) target = $region9
    $region8: #{tpu_custom_call.1} parent=1 // pred_region
      _
    $region9: #{tpu_custom_call.1} parent=1 // pred_fallthru
      _
    // Predicated region
    $region10: #{tpu_custom_call.1} parent=1 // pred_check
      _
    $region11: #{tpu_custom_call.1} parent=1 // pred_check_branch
      %22 = sbr.rel (0) target = $region13
    $region12: #{tpu_custom_call.1} parent=1 // pred_region
      _
    $region13: #{tpu_custom_call.1} parent=1 // pred_fallthru
      _
    // Predicated region
    $region14: #{tpu_custom_call.1} parent=1 // pred_check
      _
    $region15: #{tpu_custom_call.1} parent=1 // pred_check_branch
      %24 = sbr.rel (0) target = $region17
    $region16: #{tpu_custom_call.1} parent=1 // pred_region
      _
    $region17: #{tpu_custom_call.1} parent=1 // pred_fallthru
      _
    // Predicated region
    $region18: #{tpu_custom_call.1} parent=1 // pred_check
      _
    $region19: #{tpu_custom_call.1} parent=1 // pred_check_branch
      %26 = sbr.rel (0) target = $region21
    $region20: #{tpu_custom_call.1} parent=1 // pred_region
      _
    $region21: #{tpu_custom_call.1} parent=1 // pred_fallthru
      _
    // Predicated region
    $region22: #{tpu_custom_call.1} parent=1 // pred_check
      _
    $region23: #{tpu_custom_call.1} parent=1 // pred_check_branch
      %28 = sbr.rel (0) target = $region25
    $region24: #{tpu_custom_call.1} parent=1 // pred_region
      _
    $region25: #{tpu_custom_call.1} parent=1 // pred_fallthru
      _
    // Predicated region
    $region26: #{tpu_custom_call.1} parent=1 // pred_check
      _
    $region27: #{tpu_custom_call.1} parent=1 // pred_check_branch
      %30 = sbr.rel (0) target = $region29
    $region28: #{tpu_custom_call.1} parent=1 // pred_region
      _
    $region29: #{tpu_custom_call.1} parent=1 // pred_fallthru
      _
    // Predicated region
    $region30: #{tpu_custom_call.1} parent=1 // pred_check
      _
    $region31: #{tpu_custom_call.1} parent=1 // pred_check_branch
      %32 = sbr.rel (0) target = $region33
    $region32: #{tpu_custom_call.1} parent=1 // pred_region
      _
    $region33: #{tpu_custom_call.1} parent=1 // pred_fallthru
      _
    %v33 = vld [vmem:[%s0] sm:$0xff]
    %v34 = vld [vmem:[%s0 + $0x8] sm:$0xff]
    %v35 = vld [vmem:[%s0 + $0x10] sm:$0xff]
    %v36 = vld [vmem:[%s0 + $0x18] sm:$0xff]
    %v37 = vld [vmem:[%s0 + $0x20] sm:$0xff]
    %v38 = vld [vmem:[%s0 + $0x28] sm:$0xff]
    %v39 = vld [vmem:[%s0 + $0x30] sm:$0xff]
    %v40 = vld [vmem:[%s0 + $0x38] sm:$0xff]
    %v41 = vld [vmem:[%s0 + $0x40] sm:$0xff]
    %v42 = vld [vmem:[%s0 + $0x48] sm:$0xff]
    %v43 = vld [vmem:[%s0 + $0x50] sm:$0xff]
    %v44 = vld [vmem:[%s0 + $0x58] sm:$0xff]
    %v45 = vadd.f32 %v33, %v35
    %v46 = vadd.f32 %v34, %v36
    %v47 = vadd.f32 %v39, %v41
    %v48 = vadd.f32 %v40, %v42
    %v49 = vadd.f32 %v45, %v37
    %v50 = vadd.f32 %v46, %v38
    %v51 = vadd.f32 %v47, %v43
    %v52 = vadd.f32 %v48, %v44
    %v53 = vmul.f32 %v49, 0.33333334
    %v54 = vmul.f32 %v50, 0.33333334
    %v55 = vmul.f32 %v51, 0.33333334
    %v56 = vmul.f32 %v52, 0.33333334
    %v57 = vld [vmem:[%s5] sm:$0xff]
    %v58 = vld [vmem:[%s5 + $0x8] sm:$0xff]
    %vm59 = vcmask 130048
    %v61 = vsel %vm59, %v53, 0
    %v64 = vsel %vm59, %v54, 0
    %66 = vmatprep.subr.mxu0 0.0
    %67 = vmatpush1.msra.mxu0 %v57
    %68 = vmatprep.subr.mxu0 0.0
    %69 = vmatpush1.msra.mxu0 %v58
    %70 = vmatprep.subr.mxu0 0.0
    %71 = vmatpush1.msra.mxu0 0.0
    %72 = vmatprep.subr.mxu0 0.0
    %73 = vmatpush1.msra.mxu0 0.0
    %74 = vmatprep.subr.mxu0 0.0
    %75 = vmatpush1.msra.mxu0 0.0
    %76 = vmatprep.subr.mxu0 0.0
    %77 = vmatpush1.msra.mxu0 0.0
    %78 = vmatprep.subr.mxu0 0.0
    %79 = vmatpush1.msra.mxu0 0.0
    %80 = vmatprep.subr.mxu0 0.0
    %81 = vmatpush1.msra.mxu0 0.0
    %82 = vmatprep.subr.mxu0 0.0
    %83 = vmatpush1.msra.mxu0 0.0
    %84 = vmatprep.subr.mxu0 0.0
    %85 = vmatpush1.msra.mxu0 0.0
    %86 = vmatprep.subr.mxu0 0.0
    %87 = vmatpush1.msra.mxu0 0.0
    %88 = vmatprep.subr.mxu0 0.0
    %89 = vmatpush1.msra.mxu0 0.0
    %90 = vmatprep.subr.mxu0 0.0
    %91 = vmatpush1.msra.mxu0 0.0
    %92 = vmatprep.subr.mxu0 0.0
    %93 = vmatpush1.msra.mxu0 0.0
    %94 = vmatprep.subr.mxu0 0.0
    %95 = vmatpush1.msra.mxu0 0.0
    %96 = vmatprep.subr.mxu0 0.0
    %97 = vmatpush1.msra.mxu0 0.0
    %98 = vmatprep.subr.mxu0 0.0
    %99 = vmatpush1.msra.mxu0 0.0
    %100 = vmatprep.subr.mxu0 0.0
    %101 = vmatpush1.msra.mxu0 0.0
    %102 = vmatprep.subr.mxu0 0.0
    %103 = vmatpush1.msra.mxu0 0.0
    %104 = vmatprep.subr.mxu0 0.0
    %105 = vmatpush1.msra.mxu0 0.0
    %106 = vmatprep.subr.mxu0 0.0
    %107 = vmatpush1.msra.mxu0 0.0
    %108 = vmatprep.subr.mxu0 0.0
    %109 = vmatpush1.msra.mxu0 0.0
    %110 = vmatprep.subr.mxu0 0.0
    %111 = vmatpush1.msra.mxu0 0.0
    %112 = vmatprep.subr.mxu0 0.0
    %113 = vmatpush1.msra.mxu0 0.0
    %114 = vmatprep.subr.mxu0 0.0
    %115 = vmatpush1.msra.mxu0 0.0
    %116 = vmatprep.subr.mxu0 0.0
    %117 = vmatpush1.msra.mxu0 0.0
    %118 = vmatprep.subr.mxu0 0.0
    %119 = vmatpush1.msra.mxu0 0.0
    %120 = vmatprep.subr.mxu0 0.0
    %121 = vmatpush1.msra.mxu0 0.0
    %122 = vmatprep.subr.mxu0 0.0
    %123 = vmatpush1.msra.mxu0 0.0
    %124 = vmatprep.subr.mxu0 0.0
    %125 = vmatpush1.msra.mxu0 0.0
    %126 = vmatprep.subr.mxu0 0.0
    %127 = vmatpush1.msra.mxu0 0.0
    %128 = vmatprep.subr.mxu0 0.0
    %129 = vmatpush1.msra.mxu0 0.0
    %130 = vmatprep.mubr.f32.mxu0 0.0
    %131 = vmatmul.mubr.f32.gmra.mrb[0].mxu0 %v61
    %v132 = vpop.f32.mrb[0].mxu0
    %v133 = vadd.f32 0.0, %v132
    %v134 = vpop.f32.mrb[0].mxu0
    %135 = vmatprep.mubr.f32.mxu0 0.0
    %136 = vmatmul.mubr.f32.gmra.mrb[0].mxu0 %v64
    %v137 = vpop.f32.mrb[0].mxu0
    %v138 = vadd.f32 0.0, %v137
    %v139 = vpop.f32.mrb[0].mxu0
    %140 = vdwg.mxu0
    %v142 = vsel %vm59, %v55, 0
    %v145 = vsel %vm59, %v56, 0
    %147 = vmatprep.subr.mxu0 0.0
    %148 = vmatpush1.msra.mxu0 %v57
    %149 = vmatprep.subr.mxu0 0.0
    %150 = vmatpush1.msra.mxu0 %v58
    %151 = vmatprep.subr.mxu0 0.0
    %152 = vmatpush1.msra.mxu0 0.0
    %153 = vmatprep.subr.mxu0 0.0
    %154 = vmatpush1.msra.mxu0 0.0
    %155 = vmatprep.subr.mxu0 0.0
    %156 = vmatpush1.msra.mxu0 0.0
    %157 = vmatprep.subr.mxu0 0.0
    %158 = vmatpush1.msra.mxu0 0.0
    %159 = vmatprep.subr.mxu0 0.0
    %160 = vmatpush1.msra.mxu0 0.0
    %161 = vmatprep.subr.mxu0 0.0
    %162 = vmatpush1.msra.mxu0 0.0
    %163 = vmatprep.subr.mxu0 0.0
    %164 = vmatpush1.msra.mxu0 0.0
    %165 = vmatprep.subr.mxu0 0.0
    %166 = vmatpush1.msra.mxu0 0.0
    %167 = vmatprep.subr.mxu0 0.0
    %168 = vmatpush1.msra.mxu0 0.0
    %169 = vmatprep.subr.mxu0 0.0
    %170 = vmatpush1.msra.mxu0 0.0
    %171 = vmatprep.subr.mxu0 0.0
    %172 = vmatpush1.msra.mxu0 0.0
    %173 = vmatprep.subr.mxu0 0.0
    %174 = vmatpush1.msra.mxu0 0.0
    %175 = vmatprep.subr.mxu0 0.0
    %176 = vmatpush1.msra.mxu0 0.0
    %177 = vmatprep.subr.mxu0 0.0
    %178 = vmatpush1.msra.mxu0 0.0
    %179 = vmatprep.subr.mxu0 0.0
    %180 = vmatpush1.msra.mxu0 0.0
    %181 = vmatprep.subr.mxu0 0.0
    %182 = vmatpush1.msra.mxu0 0.0
    %183 = vmatprep.subr.mxu0 0.0
    %184 = vmatpush1.msra.mxu0 0.0
    %185 = vmatprep.subr.mxu0 0.0
    %186 = vmatpush1.msra.mxu0 0.0
    %187 = vmatprep.subr.mxu0 0.0
    %188 = vmatpush1.msra.mxu0 0.0
    %189 = vmatprep.subr.mxu0 0.0
    %190 = vmatpush1.msra.mxu0 0.0
    %191 = vmatprep.subr.mxu0 0.0
    %192 = vmatpush1.msra.mxu0 0.0
    %193 = vmatprep.subr.mxu0 0.0
    %194 = vmatpush1.msra.mxu0 0.0
    %195 = vmatprep.subr.mxu0 0.0
    %196 = vmatpush1.msra.mxu0 0.0
    %197 = vmatprep.subr.mxu0 0.0
    %198 = vmatpush1.msra.mxu0 0.0
    %199 = vmatprep.subr.mxu0 0.0
    %200 = vmatpush1.msra.mxu0 0.0
    %201 = vmatprep.subr.mxu0 0.0
    %202 = vmatpush1.msra.mxu0 0.0
    %203 = vmatprep.subr.mxu0 0.0
    %204 = vmatpush1.msra.mxu0 0.0
    %205 = vmatprep.subr.mxu0 0.0
    %206 = vmatpush1.msra.mxu0 0.0
    %207 = vmatprep.subr.mxu0 0.0
    %208 = vmatpush1.msra.mxu0 0.0
    %209 = vmatprep.subr.mxu0 0.0
    %210 = vmatpush1.msra.mxu0 0.0
    %211 = vmatprep.mubr.f32.mxu0 0.0
    %212 = vmatmul.mubr.f32.gmra.mrb[0].mxu0 %v142
    %v213 = vpop.f32.mrb[0].mxu0
    %v214 = vadd.f32 0.0, %v213
    %v215 = vpop.f32.mrb[0].mxu0
    %216 = vmatprep.mubr.f32.mxu0 0.0
    %217 = vmatmul.mubr.f32.gmra.mrb[0].mxu0 %v145
    %v218 = vpop.f32.mrb[0].mxu0
    %v219 = vadd.f32 0.0, %v218
    %v220 = vpop.f32.mrb[0].mxu0
    %221 = vdwg.mxu0
    %v222 = vld [vmem:[%s4] sm:$0xf]
    %v224 = vsel %vm59, %v222, 0
    %226 = vmatprep.subr.mxu0 0.0
    %227 = vmatpush1.msra.mxu0 %v133
    %228 = vmatprep.subr.mxu0 0.0
    %229 = vmatpush1.msra.mxu0 %v138
    %230 = vmatprep.subr.mxu0 0.0
    %231 = vmatpush1.msra.mxu0 0.0
    %232 = vmatprep.subr.mxu0 0.0
    %233 = vmatpush1.msra.mxu0 0.0
    %234 = vmatprep.subr.mxu0 0.0
    %235 = vmatpush1.msra.mxu0 0.0
    %236 = vmatprep.subr.mxu0 0.0
    %237 = vmatpush1.msra.mxu0 0.0
    %238 = vmatprep.subr.mxu0 0.0
    %239 = vmatpush1.msra.mxu0 0.0
    %240 = vmatprep.subr.mxu0 0.0
    %241 = vmatpush1.msra.mxu0 0.0
    %242 = vmatprep.subr.mxu0 0.0
    %243 = vmatpush1.msra.mxu0 0.0
    %244 = vmatprep.subr.mxu0 0.0
    %245 = vmatpush1.msra.mxu0 0.0
    %246 = vmatprep.subr.mxu0 0.0
    %247 = vmatpush1.msra.mxu0 0.0
    %248 = vmatprep.subr.mxu0 0.0
    %249 = vmatpush1.msra.mxu0 0.0
    %250 = vmatprep.subr.mxu0 0.0
    %251 = vmatpush1.msra.mxu0 0.0
    %252 = vmatprep.subr.mxu0 0.0
    %253 = vmatpush1.msra.mxu0 0.0
    %254 = vmatprep.subr.mxu0 0.0
    %255 = vmatpush1.msra.mxu0 0.0
    %256 = vmatprep.subr.mxu0 0.0
    %257 = vmatpush1.msra.mxu0 0.0
    %258 = vmatprep.subr.mxu0 0.0
    %259 = vmatpush1.msra.mxu0 0.0
    %260 = vmatprep.subr.mxu0 0.0
    %261 = vmatpush1.msra.mxu0 0.0
    %262 = vmatprep.subr.mxu0 0.0
    %263 = vmatpush1.msra.mxu0 0.0
    %264 = vmatprep.subr.mxu0 0.0
    %265 = vmatpush1.msra.mxu0 0.0
    %266 = vmatprep.subr.mxu0 0.0
    %267 = vmatpush1.msra.mxu0 0.0
    %268 = vmatprep.subr.mxu0 0.0
    %269 = vmatpush1.msra.mxu0 0.0
    %270 = vmatprep.subr.mxu0 0.0
    %271 = vmatpush1.msra.mxu0 0.0
    %272 = vmatprep.subr.mxu0 0.0
    %273 = vmatpush1.msra.mxu0 0.0
    %274 = vmatprep.subr.mxu0 0.0
    %275 = vmatpush1.msra.mxu0 0.0
    %276 = vmatprep.subr.mxu0 0.0
    %277 = vmatpush1.msra.mxu0 0.0
    %278 = vmatprep.subr.mxu0 0.0
    %279 = vmatpush1.msra.mxu0 0.0
    %280 = vmatprep.subr.mxu0 0.0
    %281 = vmatpush1.msra.mxu0 0.0
    %282 = vmatprep.subr.mxu0 0.0
    %283 = vmatpush1.msra.mxu0 0.0
    %284 = vmatprep.subr.mxu0 0.0
    %285 = vmatpush1.msra.mxu0 0.0
    %286 = vmatprep.subr.mxu0 0.0
    %287 = vmatpush1.msra.mxu0 0.0
    %288 = vmatprep.subr.mxu0 0.0
    %289 = vmatpush1.msra.mxu0 0.0
    %290 = vmatprep.mubr.f32.mxu0 0.0
    %291 = vmatmul.mubr.f32.gmra.mrb[0].mxu0 %v224
    %v292 = vpop.f32.mrb[0].mxu0
    %v293 = vadd.f32 0.0, %v292
    %v294 = vpop.f32.mrb[0].mxu0
    %295 = vdwg.mxu0
    %296 = vmatprep.subr.mxu0 0.0
    %297 = vmatpush1.msra.mxu0 %v214
    %298 = vmatprep.subr.mxu0 0.0
    %299 = vmatpush1.msra.mxu0 %v219
    %300 = vmatprep.subr.mxu0 0.0
    %301 = vmatpush1.msra.mxu0 0.0
    %302 = vmatprep.subr.mxu0 0.0
    %303 = vmatpush1.msra.mxu0 0.0
    %304 = vmatprep.subr.mxu0 0.0
    %305 = vmatpush1.msra.mxu0 0.0
    %306 = vmatprep.subr.mxu0 0.0
    %307 = vmatpush1.msra.mxu0 0.0
    %308 = vmatprep.subr.mxu0 0.0
    %309 = vmatpush1.msra.mxu0 0.0
    %310 = vmatprep.subr.mxu0 0.0
    %311 = vmatpush1.msra.mxu0 0.0
    %312 = vmatprep.subr.mxu0 0.0
    %313 = vmatpush1.msra.mxu0 0.0
    %314 = vmatprep.subr.mxu0 0.0
    %315 = vmatpush1.msra.mxu0 0.0
    %316 = vmatprep.subr.mxu0 0.0
    %317 = vmatpush1.msra.mxu0 0.0
    %318 = vmatprep.subr.mxu0 0.0
    %319 = vmatpush1.msra.mxu0 0.0
    %320 = vmatprep.subr.mxu0 0.0
    %321 = vmatpush1.msra.mxu0 0.0
    %322 = vmatprep.subr.mxu0 0.0
    %323 = vmatpush1.msra.mxu0 0.0
    %324 = vmatprep.subr.mxu0 0.0
    %325 = vmatpush1.msra.mxu0 0.0
    %326 = vmatprep.subr.mxu0 0.0
    %327 = vmatpush1.msra.mxu0 0.0
    %328 = vmatprep.subr.mxu0 0.0
    %329 = vmatpush1.msra.mxu0 0.0
    %330 = vmatprep.subr.mxu0 0.0
    %331 = vmatpush1.msra.mxu0 0.0
    %332 = vmatprep.subr.mxu0 0.0
    %333 = vmatpush1.msra.mxu0 0.0
    %334 = vmatprep.subr.mxu0 0.0
    %335 = vmatpush1.msra.mxu0 0.0
    %336 = vmatprep.subr.mxu0 0.0
    %337 = vmatpush1.msra.mxu0 0.0
    %338 = vmatprep.subr.mxu0 0.0
    %339 = vmatpush1.msra.mxu0 0.0
    %340 = vmatprep.subr.mxu0 0.0
    %341 = vmatpush1.msra.mxu0 0.0
    %342 = vmatprep.subr.mxu0 0.0
    %343 = vmatpush1.msra.mxu0 0.0
    %344 = vmatprep.subr.mxu0 0.0
    %345 = vmatpush1.msra.mxu0 0.0
    %346 = vmatprep.subr.mxu0 0.0
    %347 = vmatpush1.msra.mxu0 0.0
    %348 = vmatprep.subr.mxu0 0.0
    %349 = vmatpush1.msra.mxu0 0.0
    %350 = vmatprep.subr.mxu0 0.0
    %351 = vmatpush1.msra.mxu0 0.0
    %352 = vmatprep.subr.mxu0 0.0
    %353 = vmatpush1.msra.mxu0 0.0
    %354 = vmatprep.subr.mxu0 0.0
    %355 = vmatpush1.msra.mxu0 0.0
    %356 = vmatprep.subr.mxu0 0.0
    %357 = vmatpush1.msra.mxu0 0.0
    %358 = vmatprep.subr.mxu0 0.0
    %359 = vmatpush1.msra.mxu0 0.0
    %360 = vmatprep.mubr.f32.mxu0 0.0
    %361 = vmatmul.mubr.f32.gmra.mrb[0].mxu0 %v224
    %v362 = vpop.f32.mrb[0].mxu0
    %v363 = vadd.f32 0.0, %v362
    %v364 = vpop.f32.mrb[0].mxu0
    %365 = vdwg.mxu0
    %v366 = vld [vmem:[%s1] sm:$0xf]
    %v367 = vld [vmem:[%s1 + $0x8] sm:$0xf]
    %v368 = vld [vmem:[%s1] sm:$0xf0]
    %v369 = vld [vmem:[%s1 + $0x8] sm:$0xf0]
    %v371 = vrot.slane %v293, 1
    %v374 = vrot.slane %v368, 4
    %v375 = vrot.slane %v369, 4
    %vm376 = vcmask 31744
    %v377 = vsel %vm376, %v371, 0
    %vm379 = vcmask 1043456
    %v380 = vsel %vm379, %v374, 0
    %v382 = vsel %vm379, %v375, 0
    %384 = vmatprep.subr.mxu0 %v382
    %385 = vmatpush1.msra.mxu0 %v380
    %386 = vmatprep.subr.mxu0 0.0
    %387 = vmatpush1.msra.mxu0 0.0
    %388 = vmatprep.subr.mxu0 0.0
    %389 = vmatpush1.msra.mxu0 0.0
    %390 = vmatprep.subr.mxu0 0.0
    %391 = vmatpush1.msra.mxu0 0.0
    %392 = vmatprep.subr.mxu0 0.0
    %393 = vmatpush1.msra.mxu0 0.0
    %394 = vmatprep.subr.mxu0 0.0
    %395 = vmatpush1.msra.mxu0 0.0
    %396 = vmatprep.subr.mxu0 0.0
    %397 = vmatpush1.msra.mxu0 0.0
    %398 = vmatprep.subr.mxu0 0.0
    %399 = vmatpush1.msra.mxu0 0.0
    %400 = vmatprep.subr.mxu0 0.0
    %401 = vmatpush1.msra.mxu0 0.0
    %402 = vmatprep.subr.mxu0 0.0
    %403 = vmatpush1.msra.mxu0 0.0
    %404 = vmatprep.subr.mxu0 0.0
    %405 = vmatpush1.msra.mxu0 0.0
    %406 = vmatprep.subr.mxu0 0.0
    %407 = vmatpush1.msra.mxu0 0.0
    %408 = vmatprep.subr.mxu0 0.0
    %409 = vmatpush1.msra.mxu0 0.0
    %410 = vmatprep.subr.mxu0 0.0
    %411 = vmatpush1.msra.mxu0 0.0
    %412 = vmatprep.subr.mxu0 0.0
    %413 = vmatpush1.msra.mxu0 0.0
    %414 = vmatprep.subr.mxu0 0.0
    %415 = vmatpush1.msra.mxu0 0.0
    %416 = vmatprep.subr.mxu0 0.0
    %417 = vmatpush1.msra.mxu0 0.0
    %418 = vmatprep.subr.mxu0 0.0
    %419 = vmatpush1.msra.mxu0 0.0
    %420 = vmatprep.subr.mxu0 0.0
    %421 = vmatpush1.msra.mxu0 0.0
    %422 = vmatprep.subr.mxu0 0.0
    %423 = vmatpush1.msra.mxu0 0.0
    %424 = vmatprep.subr.mxu0 0.0
    %425 = vmatpush1.msra.mxu0 0.0
    %426 = vmatprep.subr.mxu0 0.0
    %427 = vmatpush1.msra.mxu0 0.0
    %428 = vmatprep.subr.mxu0 0.0
    %429 = vmatpush1.msra.mxu0 0.0
    %430 = vmatprep.subr.mxu0 0.0
    %431 = vmatpush1.msra.mxu0 0.0
    %432 = vmatprep.subr.mxu0 0.0
    %433 = vmatpush1.msra.mxu0 0.0
    %434 = vmatprep.subr.mxu0 0.0
    %435 = vmatpush1.msra.mxu0 0.0
    %436 = vmatprep.subr.mxu0 0.0
    %437 = vmatpush1.msra.mxu0 0.0
    %438 = vmatprep.subr.mxu0 0.0
    %439 = vmatpush1.msra.mxu0 0.0
    %440 = vmatprep.subr.mxu0 0.0
    %441 = vmatpush1.msra.mxu0 0.0
    %442 = vmatprep.subr.mxu0 0.0
    %443 = vmatpush1.msra.mxu0 0.0
    %444 = vmatprep.subr.mxu0 0.0
    %445 = vmatpush1.msra.mxu0 0.0
    %446 = vmatprep.subr.mxu0 0.0
    %447 = vmatpush1.msra.mxu0 0.0
    %448 = vmatprep.mubr.f32.mxu0 0.0
    %449 = vmatmul.mubr.f32.gmra.mrb[0].mxu0 %v377
    %v450 = vpop.f32.mrb[0].mxu0
    %v451 = vadd.f32 0.0, %v450
    %v452 = vpop.f32.mrb[0].mxu0
    %v453 = vadd.f32 0.0, %v452
    %454 = vdwg.mxu0
    %v456 = vrot.slane %v363, 1
    %v457 = vsel %vm376, %v456, 0
    %459 = vmatprep.subr.mxu0 %v382
    %460 = vmatpush1.msra.mxu0 %v380
    %461 = vmatprep.subr.mxu0 0.0
    %462 = vmatpush1.msra.mxu0 0.0
    %463 = vmatprep.subr.mxu0 0.0
    %464 = vmatpush1.msra.mxu0 0.0
    %465 = vmatprep.subr.mxu0 0.0
    %466 = vmatpush1.msra.mxu0 0.0
    %467 = vmatprep.subr.mxu0 0.0
    %468 = vmatpush1.msra.mxu0 0.0
    %469 = vmatprep.subr.mxu0 0.0
    %470 = vmatpush1.msra.mxu0 0.0
    %471 = vmatprep.subr.mxu0 0.0
    %472 = vmatpush1.msra.mxu0 0.0
    %473 = vmatprep.subr.mxu0 0.0
    %474 = vmatpush1.msra.mxu0 0.0
    %475 = vmatprep.subr.mxu0 0.0
    %476 = vmatpush1.msra.mxu0 0.0
    %477 = vmatprep.subr.mxu0 0.0
    %478 = vmatpush1.msra.mxu0 0.0
    %479 = vmatprep.subr.mxu0 0.0
    %480 = vmatpush1.msra.mxu0 0.0
    %481 = vmatprep.subr.mxu0 0.0
    %482 = vmatpush1.msra.mxu0 0.0
    %483 = vmatprep.subr.mxu0 0.0
    %484 = vmatpush1.msra.mxu0 0.0
    %485 = vmatprep.subr.mxu0 0.0
    %486 = vmatpush1.msra.mxu0 0.0
    %487 = vmatprep.subr.mxu0 0.0
    %488 = vmatpush1.msra.mxu0 0.0
    %489 = vmatprep.subr.mxu0 0.0
    %490 = vmatpush1.msra.mxu0 0.0
    %491 = vmatprep.subr.mxu0 0.0
    %492 = vmatpush1.msra.mxu0 0.0
    %493 = vmatprep.subr.mxu0 0.0
    %494 = vmatpush1.msra.mxu0 0.0
    %495 = vmatprep.subr.mxu0 0.0
    %496 = vmatpush1.msra.mxu0 0.0
    %497 = vmatprep.subr.mxu0 0.0
    %498 = vmatpush1.msra.mxu0 0.0
    %499 = vmatprep.subr.mxu0 0.0
    %500 = vmatpush1.msra.mxu0 0.0
    %501 = vmatprep.subr.mxu0 0.0
    %502 = vmatpush1.msra.mxu0 0.0
    %503 = vmatprep.subr.mxu0 0.0
    %504 = vmatpush1.msra.mxu0 0.0
    %505 = vmatprep.subr.mxu0 0.0
    %506 = vmatpush1.msra.mxu0 0.0
    %507 = vmatprep.subr.mxu0 0.0
    %508 = vmatpush1.msra.mxu0 0.0
    %509 = vmatprep.subr.mxu0 0.0
    %510 = vmatpush1.msra.mxu0 0.0
    %511 = vmatprep.subr.mxu0 0.0
    %512 = vmatpush1.msra.mxu0 0.0
    %513 = vmatprep.subr.mxu0 0.0
    %514 = vmatpush1.msra.mxu0 0.0
    %515 = vmatprep.subr.mxu0 0.0
    %516 = vmatpush1.msra.mxu0 0.0
    %517 = vmatprep.subr.mxu0 0.0
    %518 = vmatpush1.msra.mxu0 0.0
    %519 = vmatprep.subr.mxu0 0.0
    %520 = vmatpush1.msra.mxu0 0.0
    %521 = vmatprep.subr.mxu0 0.0
    %522 = vmatpush1.msra.mxu0 0.0
    %523 = vmatprep.mubr.f32.mxu0 0.0
    %524 = vmatmul.mubr.f32.gmra.mrb[0].mxu0 %v457
    %v525 = vpop.f32.mrb[0].mxu0
    %v526 = vadd.f32 0.0, %v525
    %v527 = vpop.f32.mrb[0].mxu0
    %v528 = vadd.f32 0.0, %v527
    %529 = vdwg.mxu0
    %v530 = vsel %vm376, %v293, 0
    %v533 = vsel %vm379, %v366, 0
    %v536 = vsel %vm379, %v367, 0
    %538 = vmatprep.subr.mxu0 %v536
    %539 = vmatpush1.msra.mxu0 %v533
    %540 = vmatprep.subr.mxu0 0.0
    %541 = vmatpush1.msra.mxu0 0.0
    %542 = vmatprep.subr.mxu0 0.0
    %543 = vmatpush1.msra.mxu0 0.0
    %544 = vmatprep.subr.mxu0 0.0
    %545 = vmatpush1.msra.mxu0 0.0
    %546 = vmatprep.subr.mxu0 0.0
    %547 = vmatpush1.msra.mxu0 0.0
    %548 = vmatprep.subr.mxu0 0.0
    %549 = vmatpush1.msra.mxu0 0.0
    %550 = vmatprep.subr.mxu0 0.0
    %551 = vmatpush1.msra.mxu0 0.0
    %552 = vmatprep.subr.mxu0 0.0
    %553 = vmatpush1.msra.mxu0 0.0
    %554 = vmatprep.subr.mxu0 0.0
    %555 = vmatpush1.msra.mxu0 0.0
    %556 = vmatprep.subr.mxu0 0.0
    %557 = vmatpush1.msra.mxu0 0.0
    %558 = vmatprep.subr.mxu0 0.0
    %559 = vmatpush1.msra.mxu0 0.0
    %560 = vmatprep.subr.mxu0 0.0
    %561 = vmatpush1.msra.mxu0 0.0
    %562 = vmatprep.subr.mxu0 0.0
    %563 = vmatpush1.msra.mxu0 0.0
    %564 = vmatprep.subr.mxu0 0.0
    %565 = vmatpush1.msra.mxu0 0.0
    %566 = vmatprep.subr.mxu0 0.0
    %567 = vmatpush1.msra.mxu0 0.0
    %568 = vmatprep.subr.mxu0 0.0
    %569 = vmatpush1.msra.mxu0 0.0
    %570 = vmatprep.subr.mxu0 0.0
    %571 = vmatpush1.msra.mxu0 0.0
    %572 = vmatprep.subr.mxu0 0.0
    %573 = vmatpush1.msra.mxu0 0.0
    %574 = vmatprep.subr.mxu0 0.0
    %575 = vmatpush1.msra.mxu0 0.0
    %576 = vmatprep.subr.mxu0 0.0
    %577 = vmatpush1.msra.mxu0 0.0
    %578 = vmatprep.subr.mxu0 0.0
    %579 = vmatpush1.msra.mxu0 0.0
    %580 = vmatprep.subr.mxu0 0.0
    %581 = vmatpush1.msra.mxu0 0.0
    %582 = vmatprep.subr.mxu0 0.0
    %583 = vmatpush1.msra.mxu0 0.0
    %584 = vmatprep.subr.mxu0 0.0
    %585 = vmatpush1.msra.mxu0 0.0
    %586 = vmatprep.subr.mxu0 0.0
    %587 = vmatpush1.msra.mxu0 0.0
    %588 = vmatprep.subr.mxu0 0.0
    %589 = vmatpush1.msra.mxu0 0.0
    %590 = vmatprep.subr.mxu0 0.0
    %591 = vmatpush1.msra.mxu0 0.0
    %592 = vmatprep.subr.mxu0 0.0
    %593 = vmatpush1.msra.mxu0 0.0
    %594 = vmatprep.subr.mxu0 0.0
    %595 = vmatpush1.msra.mxu0 0.0
    %596 = vmatprep.subr.mxu0 0.0
    %597 = vmatpush1.msra.mxu0 0.0
    %598 = vmatprep.subr.mxu0 0.0
    %599 = vmatpush1.msra.mxu0 0.0
    %600 = vmatprep.subr.mxu0 0.0
    %601 = vmatpush1.msra.mxu0 0.0
    %602 = vmatprep.mubr.f32.mxu0 0.0
    %603 = vmatmul.mubr.f32.gmra.mrb[0].mxu0 %v530
    %v604 = vpop.f32.mrb[0].mxu0
    %v605 = vadd.f32 %v451, %v604
    %v606 = vpop.f32.mrb[0].mxu0
    %v607 = vadd.f32 %v453, %v606
    %608 = vdwg.mxu0
    %v609 = vsel %vm376, %v363, 0
    %611 = vmatprep.subr.mxu0 %v536
    %612 = vmatpush1.msra.mxu0 %v533
    %613 = vmatprep.subr.mxu0 0.0
    %614 = vmatpush1.msra.mxu0 0.0
    %615 = vmatprep.subr.mxu0 0.0
    %616 = vmatpush1.msra.mxu0 0.0
    %617 = vmatprep.subr.mxu0 0.0
    %618 = vmatpush1.msra.mxu0 0.0
    %619 = vmatprep.subr.mxu0 0.0
    %620 = vmatpush1.msra.mxu0 0.0
    %621 = vmatprep.subr.mxu0 0.0
    %622 = vmatpush1.msra.mxu0 0.0
    %623 = vmatprep.subr.mxu0 0.0
    %624 = vmatpush1.msra.mxu0 0.0
    %625 = vmatprep.subr.mxu0 0.0
    %626 = vmatpush1.msra.mxu0 0.0
    %627 = vmatprep.subr.mxu0 0.0
    %628 = vmatpush1.msra.mxu0 0.0
    %629 = vmatprep.subr.mxu0 0.0
    %630 = vmatpush1.msra.mxu0 0.0
    %631 = vmatprep.subr.mxu0 0.0
    %632 = vmatpush1.msra.mxu0 0.0
    %633 = vmatprep.subr.mxu0 0.0
    %634 = vmatpush1.msra.mxu0 0.0
    %635 = vmatprep.subr.mxu0 0.0
    %636 = vmatpush1.msra.mxu0 0.0
    %637 = vmatprep.subr.mxu0 0.0
    %638 = vmatpush1.msra.mxu0 0.0
    %639 = vmatprep.subr.mxu0 0.0
    %640 = vmatpush1.msra.mxu0 0.0
    %641 = vmatprep.subr.mxu0 0.0
    %642 = vmatpush1.msra.mxu0 0.0
    %643 = vmatprep.subr.mxu0 0.0
    %644 = vmatpush1.msra.mxu0 0.0
    %645 = vmatprep.subr.mxu0 0.0
    %646 = vmatpush1.msra.mxu0 0.0
    %647 = vmatprep.subr.mxu0 0.0
    %648 = vmatpush1.msra.mxu0 0.0
    %649 = vmatprep.subr.mxu0 0.0
    %650 = vmatpush1.msra.mxu0 0.0
    %651 = vmatprep.subr.mxu0 0.0
    %652 = vmatpush1.msra.mxu0 0.0
    %653 = vmatprep.subr.mxu0 0.0
    %654 = vmatpush1.msra.mxu0 0.0
    %655 = vmatprep.subr.mxu0 0.0
    %656 = vmatpush1.msra.mxu0 0.0
    %657 = vmatprep.subr.mxu0 0.0
    %658 = vmatpush1.msra.mxu0 0.0
    %659 = vmatprep.subr.mxu0 0.0
    %660 = vmatpush1.msra.mxu0 0.0
    %661 = vmatprep.subr.mxu0 0.0
    %662 = vmatpush1.msra.mxu0 0.0
    %663 = vmatprep.subr.mxu0 0.0
    %664 = vmatpush1.msra.mxu0 0.0
    %665 = vmatprep.subr.mxu0 0.0
    %666 = vmatpush1.msra.mxu0 0.0
    %667 = vmatprep.subr.mxu0 0.0
    %668 = vmatpush1.msra.mxu0 0.0
    %669 = vmatprep.subr.mxu0 0.0
    %670 = vmatpush1.msra.mxu0 0.0
    %671 = vmatprep.subr.mxu0 0.0
    %672 = vmatpush1.msra.mxu0 0.0
    %673 = vmatprep.subr.mxu0 0.0
    %674 = vmatpush1.msra.mxu0 0.0
    %675 = vmatprep.mubr.f32.mxu0 0.0
    %676 = vmatmul.mubr.f32.gmra.mrb[0].mxu0 %v609
    %v677 = vpop.f32.mrb[0].mxu0
    %v678 = vadd.f32 %v526, %v677
    %v679 = vpop.f32.mrb[0].mxu0
    %v680 = vadd.f32 %v528, %v679
    %681 = vdwg.mxu0
    %v682 = vld [vmem:[%s1 + $0x10] sm:$0xf]
    %v683 = vld [vmem:[%s1 + $0x18] sm:$0xf]
    %v684 = vrot.slane %v293, 2
    %v685 = vsel %vm376, %v684, 0
    %v688 = vsel %vm379, %v682, 0
    %v691 = vsel %vm379, %v683, 0
    %693 = vmatprep.subr.mxu0 %v691
    %694 = vmatpush1.msra.mxu0 %v688
    %695 = vmatprep.subr.mxu0 0.0
    %696 = vmatpush1.msra.mxu0 0.0
    %697 = vmatprep.subr.mxu0 0.0
    %698 = vmatpush1.msra.mxu0 0.0
    %699 = vmatprep.subr.mxu0 0.0
    %700 = vmatpush1.msra.mxu0 0.0
    %701 = vmatprep.subr.mxu0 0.0
    %702 = vmatpush1.msra.mxu0 0.0
    %703 = vmatprep.subr.mxu0 0.0
    %704 = vmatpush1.msra.mxu0 0.0
    %705 = vmatprep.subr.mxu0 0.0
    %706 = vmatpush1.msra.mxu0 0.0
    %707 = vmatprep.subr.mxu0 0.0
    %708 = vmatpush1.msra.mxu0 0.0
    %709 = vmatprep.subr.mxu0 0.0
    %710 = vmatpush1.msra.mxu0 0.0
    %711 = vmatprep.subr.mxu0 0.0
    %712 = vmatpush1.msra.mxu0 0.0
    %713 = vmatprep.subr.mxu0 0.0
    %714 = vmatpush1.msra.mxu0 0.0
    %715 = vmatprep.subr.mxu0 0.0
    %716 = vmatpush1.msra.mxu0 0.0
    %717 = vmatprep.subr.mxu0 0.0
    %718 = vmatpush1.msra.mxu0 0.0
    %719 = vmatprep.subr.mxu0 0.0
    %720 = vmatpush1.msra.mxu0 0.0
    %721 = vmatprep.subr.mxu0 0.0
    %722 = vmatpush1.msra.mxu0 0.0
    %723 = vmatprep.subr.mxu0 0.0
    %724 = vmatpush1.msra.mxu0 0.0
    %725 = vmatprep.subr.mxu0 0.0
    %726 = vmatpush1.msra.mxu0 0.0
    %727 = vmatprep.subr.mxu0 0.0
    %728 = vmatpush1.msra.mxu0 0.0
    %729 = vmatprep.subr.mxu0 0.0
    %730 = vmatpush1.msra.mxu0 0.0
    %731 = vmatprep.subr.mxu0 0.0
    %732 = vmatpush1.msra.mxu0 0.0
    %733 = vmatprep.subr.mxu0 0.0
    %734 = vmatpush1.msra.mxu0 0.0
    %735 = vmatprep.subr.mxu0 0.0
    %736 = vmatpush1.msra.mxu0 0.0
    %737 = vmatprep.subr.mxu0 0.0
    %738 = vmatpush1.msra.mxu0 0.0
    %739 = vmatprep.subr.mxu0 0.0
    %740 = vmatpush1.msra.mxu0 0.0
    %741 = vmatprep.subr.mxu0 0.0
    %742 = vmatpush1.msra.mxu0 0.0
    %743 = vmatprep.subr.mxu0 0.0
    %744 = vmatpush1.msra.mxu0 0.0
    %745 = vmatprep.subr.mxu0 0.0
    %746 = vmatpush1.msra.mxu0 0.0
    %747 = vmatprep.subr.mxu0 0.0
    %748 = vmatpush1.msra.mxu0 0.0
    %749 = vmatprep.subr.mxu0 0.0
    %750 = vmatpush1.msra.mxu0 0.0
    %751 = vmatprep.subr.mxu0 0.0
    %752 = vmatpush1.msra.mxu0 0.0
    %753 = vmatprep.subr.mxu0 0.0
    %754 = vmatpush1.msra.mxu0 0.0
    %755 = vmatprep.subr.mxu0 0.0
    %756 = vmatpush1.msra.mxu0 0.0
    %757 = vmatprep.mubr.f32.mxu0 0.0
    %758 = vmatmul.mubr.f32.gmra.mrb[0].mxu0 %v685
    %v759 = vpop.f32.mrb[0].mxu0
    %v760 = vadd.f32 0.0, %v759
    %v761 = vpop.f32.mrb[0].mxu0
    %v762 = vadd.f32 0.0, %v761
    %763 = vdwg.mxu0
    %v764 = vrot.slane %v363, 2
    %v765 = vsel %vm376, %v764, 0
    %767 = vmatprep.subr.mxu0 %v691
    %768 = vmatpush1.msra.mxu0 %v688
    %769 = vmatprep.subr.mxu0 0.0
    %770 = vmatpush1.msra.mxu0 0.0
    %771 = vmatprep.subr.mxu0 0.0
    %772 = vmatpush1.msra.mxu0 0.0
    %773 = vmatprep.subr.mxu0 0.0
    %774 = vmatpush1.msra.mxu0 0.0
    %775 = vmatprep.subr.mxu0 0.0
    %776 = vmatpush1.msra.mxu0 0.0
    %777 = vmatprep.subr.mxu0 0.0
    %778 = vmatpush1.msra.mxu0 0.0
    %779 = vmatprep.subr.mxu0 0.0
    %780 = vmatpush1.msra.mxu0 0.0
    %781 = vmatprep.subr.mxu0 0.0
    %782 = vmatpush1.msra.mxu0 0.0
    %783 = vmatprep.subr.mxu0 0.0
    %784 = vmatpush1.msra.mxu0 0.0
    %785 = vmatprep.subr.mxu0 0.0
    %786 = vmatpush1.msra.mxu0 0.0
    %787 = vmatprep.subr.mxu0 0.0
    %788 = vmatpush1.msra.mxu0 0.0
    %789 = vmatprep.subr.mxu0 0.0
    %790 = vmatpush1.msra.mxu0 0.0
    %791 = vmatprep.subr.mxu0 0.0
    %792 = vmatpush1.msra.mxu0 0.0
    %793 = vmatprep.subr.mxu0 0.0
    %794 = vmatpush1.msra.mxu0 0.0
    %795 = vmatprep.subr.mxu0 0.0
    %796 = vmatpush1.msra.mxu0 0.0
    %797 = vmatprep.subr.mxu0 0.0
    %798 = vmatpush1.msra.mxu0 0.0
    %799 = vmatprep.subr.mxu0 0.0
    %800 = vmatpush1.msra.mxu0 0.0
    %801 = vmatprep.subr.mxu0 0.0
    %802 = vmatpush1.msra.mxu0 0.0
    %803 = vmatprep.subr.mxu0 0.0
    %804 = vmatpush1.msra.mxu0 0.0
    %805 = vmatprep.subr.mxu0 0.0
    %806 = vmatpush1.msra.mxu0 0.0
    %807 = vmatprep.subr.mxu0 0.0
    %808 = vmatpush1.msra.mxu0 0.0
    %809 = vmatprep.subr.mxu0 0.0
    %810 = vmatpush1.msra.mxu0 0.0
    %811 = vmatprep.subr.mxu0 0.0
    %812 = vmatpush1.msra.mxu0 0.0
    %813 = vmatprep.subr.mxu0 0.0
    %814 = vmatpush1.msra.mxu0 0.0
    %815 = vmatprep.subr.mxu0 0.0
    %816 = vmatpush1.msra.mxu0 0.0
    %817 = vmatprep.subr.mxu0 0.0
    %818 = vmatpush1.msra.mxu0 0.0
    %819 = vmatprep.subr.mxu0 0.0
    %820 = vmatpush1.msra.mxu0 0.0
    %821 = vmatprep.subr.mxu0 0.0
    %822 = vmatpush1.msra.mxu0 0.0
    %823 = vmatprep.subr.mxu0 0.0
    %824 = vmatpush1.msra.mxu0 0.0
    %825 = vmatprep.subr.mxu0 0.0
    %826 = vmatpush1.msra.mxu0 0.0
    %827 = vmatprep.subr.mxu0 0.0
    %828 = vmatpush1.msra.mxu0 0.0
    %829 = vmatprep.subr.mxu0 0.0
    %830 = vmatpush1.msra.mxu0 0.0
    %831 = vmatprep.mubr.f32.mxu0 0.0
    %832 = vmatmul.mubr.f32.gmra.mrb[0].mxu0 %v765
    %v833 = vpop.f32.mrb[0].mxu0
    %v834 = vadd.f32 0.0, %v833
    %v835 = vpop.f32.mrb[0].mxu0
    %v836 = vadd.f32 0.0, %v835
    %837 = vdwg.mxu0
    %v838 = vadd.f32 %v605, %v760
    %v839 = vadd.f32 %v607, %v762
    %v840 = vadd.f32 %v678, %v834
    %v841 = vadd.f32 %v680, %v836
    %v842 = vld [vmem:[%s1 + $0x10] sm:$0xf0]
    %v843 = vld [vmem:[%s1 + $0x18] sm:$0xf0]
    %v844 = vrot.slane %v293, 3
    %v847 = vrot.slane %v842, 4
    %v848 = vrot.slane %v843, 4
    %v849 = vsel %vm376, %v844, 0
    %v851 = vsel %vm379, %v847, 0
    %v853 = vsel %vm379, %v848, 0
    %855 = vmatprep.subr.mxu0 %v853
    %856 = vmatpush1.msra.mxu0 %v851
    %857 = vmatprep.subr.mxu0 0.0
    %858 = vmatpush1.msra.mxu0 0.0
    %859 = vmatprep.subr.mxu0 0.0
    %860 = vmatpush1.msra.mxu0 0.0
    %861 = vmatprep.subr.mxu0 0.0
    %862 = vmatpush1.msra.mxu0 0.0
    %863 = vmatprep.subr.mxu0 0.0
    %864 = vmatpush1.msra.mxu0 0.0
    %865 = vmatprep.subr.mxu0 0.0
    %866 = vmatpush1.msra.mxu0 0.0
    %867 = vmatprep.subr.mxu0 0.0
    %868 = vmatpush1.msra.mxu0 0.0
    %869 = vmatprep.subr.mxu0 0.0
    %870 = vmatpush1.msra.mxu0 0.0
    %871 = vmatprep.subr.mxu0 0.0
    %872 = vmatpush1.msra.mxu0 0.0
    %873 = vmatprep.subr.mxu0 0.0
    %874 = vmatpush1.msra.mxu0 0.0
    %875 = vmatprep.subr.mxu0 0.0
    %876 = vmatpush1.msra.mxu0 0.0
    %877 = vmatprep.subr.mxu0 0.0
    %878 = vmatpush1.msra.mxu0 0.0
    %879 = vmatprep.subr.mxu0 0.0
    %880 = vmatpush1.msra.mxu0 0.0
    %881 = vmatprep.subr.mxu0 0.0
    %882 = vmatpush1.msra.mxu0 0.0
    %883 = vmatprep.subr.mxu0 0.0
    %884 = vmatpush1.msra.mxu0 0.0
    %885 = vmatprep.subr.mxu0 0.0
    %886 = vmatpush1.msra.mxu0 0.0
    %887 = vmatprep.subr.mxu0 0.0
    %888 = vmatpush1.msra.mxu0 0.0
    %889 = vmatprep.subr.mxu0 0.0
    %890 = vmatpush1.msra.mxu0 0.0
    %891 = vmatprep.subr.mxu0 0.0
    %892 = vmatpush1.msra.mxu0 0.0
    %893 = vmatprep.subr.mxu0 0.0
    %894 = vmatpush1.msra.mxu0 0.0
    %895 = vmatprep.subr.mxu0 0.0
    %896 = vmatpush1.msra.mxu0 0.0
    %897 = vmatprep.subr.mxu0 0.0
    %898 = vmatpush1.msra.mxu0 0.0
    %899 = vmatprep.subr.mxu0 0.0
    %900 = vmatpush1.msra.mxu0 0.0
    %901 = vmatprep.subr.mxu0 0.0
    %902 = vmatpush1.msra.mxu0 0.0
    %903 = vmatprep.subr.mxu0 0.0
    %904 = vmatpush1.msra.mxu0 0.0
    %905 = vmatprep.subr.mxu0 0.0
    %906 = vmatpush1.msra.mxu0 0.0
    %907 = vmatprep.subr.mxu0 0.0
    %908 = vmatpush1.msra.mxu0 0.0
    %909 = vmatprep.subr.mxu0 0.0
    %910 = vmatpush1.msra.mxu0 0.0
    %911 = vmatprep.subr.mxu0 0.0
    %912 = vmatpush1.msra.mxu0 0.0
    %913 = vmatprep.subr.mxu0 0.0
    %914 = vmatpush1.msra.mxu0 0.0
    %915 = vmatprep.subr.mxu0 0.0
    %916 = vmatpush1.msra.mxu0 0.0
    %917 = vmatprep.subr.mxu0 0.0
    %918 = vmatpush1.msra.mxu0 0.0
    %919 = vmatprep.mubr.f32.mxu0 0.0
    %920 = vmatmul.mubr.f32.gmra.mrb[0].mxu0 %v849
    %v921 = vpop.f32.mrb[0].mxu0
    %v922 = vadd.f32 0.0, %v921
    %v923 = vpop.f32.mrb[0].mxu0
    %v924 = vadd.f32 0.0, %v923
    %925 = vdwg.mxu0
    %v926 = vrot.slane %v363, 3
    %v927 = vsel %vm376, %v926, 0
    %929 = vmatprep.subr.mxu0 %v853
    %930 = vmatpush1.msra.mxu0 %v851
    %931 = vmatprep.subr.mxu0 0.0
    %932 = vmatpush1.msra.mxu0 0.0
    %933 = vmatprep.subr.mxu0 0.0
    %934 = vmatpush1.msra.mxu0 0.0
    %935 = vmatprep.subr.mxu0 0.0
    %936 = vmatpush1.msra.mxu0 0.0
    %937 = vmatprep.subr.mxu0 0.0
    %938 = vmatpush1.msra.mxu0 0.0
    %939 = vmatprep.subr.mxu0 0.0
    %940 = vmatpush1.msra.mxu0 0.0
    %941 = vmatprep.subr.mxu0 0.0
    %942 = vmatpush1.msra.mxu0 0.0
    %943 = vmatprep.subr.mxu0 0.0
    %944 = vmatpush1.msra.mxu0 0.0
    %945 = vmatprep.subr.mxu0 0.0
    %946 = vmatpush1.msra.mxu0 0.0
    %947 = vmatprep.subr.mxu0 0.0
    %948 = vmatpush1.msra.mxu0 0.0
    %949 = vmatprep.subr.mxu0 0.0
    %950 = vmatpush1.msra.mxu0 0.0
    %951 = vmatprep.subr.mxu0 0.0
    %952 = vmatpush1.msra.mxu0 0.0
    %953 = vmatprep.subr.mxu0 0.0
    %954 = vmatpush1.msra.mxu0 0.0
    %955 = vmatprep.subr.mxu0 0.0
    %956 = vmatpush1.msra.mxu0 0.0
    %957 = vmatprep.subr.mxu0 0.0
    %958 = vmatpush1.msra.mxu0 0.0
    %959 = vmatprep.subr.mxu0 0.0
    %960 = vmatpush1.msra.mxu0 0.0
    %961 = vmatprep.subr.mxu0 0.0
    %962 = vmatpush1.msra.mxu0 0.0
    %963 = vmatprep.subr.mxu0 0.0
    %964 = vmatpush1.msra.mxu0 0.0
    %965 = vmatprep.subr.mxu0 0.0
    %966 = vmatpush1.msra.mxu0 0.0
    %967 = vmatprep.subr.mxu0 0.0
    %968 = vmatpush1.msra.mxu0 0.0
    %969 = vmatprep.subr.mxu0 0.0
    %970 = vmatpush1.msra.mxu0 0.0
    %971 = vmatprep.subr.mxu0 0.0
    %972 = vmatpush1.msra.mxu0 0.0
    %973 = vmatprep.subr.mxu0 0.0
    %974 = vmatpush1.msra.mxu0 0.0
    %975 = vmatprep.subr.mxu0 0.0
    %976 = vmatpush1.msra.mxu0 0.0
    %977 = vmatprep.subr.mxu0 0.0
    %978 = vmatpush1.msra.mxu0 0.0
    %979 = vmatprep.subr.mxu0 0.0
    %980 = vmatpush1.msra.mxu0 0.0
    %981 = vmatprep.subr.mxu0 0.0
    %982 = vmatpush1.msra.mxu0 0.0
    %983 = vmatprep.subr.mxu0 0.0
    %984 = vmatpush1.msra.mxu0 0.0
    %985 = vmatprep.subr.mxu0 0.0
    %986 = vmatpush1.msra.mxu0 0.0
    %987 = vmatprep.subr.mxu0 0.0
    %988 = vmatpush1.msra.mxu0 0.0
    %989 = vmatprep.subr.mxu0 0.0
    %990 = vmatpush1.msra.mxu0 0.0
    %991 = vmatprep.subr.mxu0 0.0
    %992 = vmatpush1.msra.mxu0 0.0
    %993 = vmatprep.mubr.f32.mxu0 0.0
    %994 = vmatmul.mubr.f32.gmra.mrb[0].mxu0 %v927
    %v995 = vpop.f32.mrb[0].mxu0
    %v996 = vadd.f32 0.0, %v995
    %v997 = vpop.f32.mrb[0].mxu0
    %v998 = vadd.f32 0.0, %v997
    %999 = vdwg.mxu0
    %v1000 = vadd.f32 %v838, %v922
    %v1001 = vadd.f32 %v839, %v924
    %v1002 = vadd.f32 %v840, %v996
    %v1003 = vadd.f32 %v841, %v998
    %v1004 = vmax.f32 %v1000, 0.0
    %v1005 = vmax.f32 %v1001, 0.0
    %v1006 = vmax.f32 %v1002, 0.0
    %v1007 = vmax.f32 %v1003, 0.0
    %v1008 = vld [vmem:[%s2] sm:$0xff]
    %v1009 = vld [vmem:[%s2 + $0x8] sm:$0xff]
    %v1010 = vld [vmem:[%s2 + $0x10] sm:$0xff]
    %v1011 = vld [vmem:[%s2 + $0x18] sm:$0xff]
    %v1012 = vld [vmem:[%s2 + $0x20] sm:$0xff]
    %v1013 = vld [vmem:[%s2 + $0x28] sm:$0xff]
    %v1014 = vld [vmem:[%s2 + $0x30] sm:$0xff]
    %v1015 = vld [vmem:[%s2 + $0x38] sm:$0xff]
    %v1016 = vld [vmem:[%s2 + $0x40] sm:$0xff]
    %v1017 = vld [vmem:[%s2 + $0x48] sm:$0xff]
    %v1018 = vld [vmem:[%s2 + $0x50] sm:$0xff]
    %v1019 = vld [vmem:[%s2 + $0x58] sm:$0xff]
    %v1020 = vld [vmem:[%s2 + $0x60] sm:$0xff]
    %v1021 = vld [vmem:[%s2 + $0x68] sm:$0xff]
    %v1022 = vld [vmem:[%s2 + $0x70] sm:$0xff]
    %v1023 = vld [vmem:[%s2 + $0x78] sm:$0xff]
    %v1024 = vld [vmem:[%s2 + $0x80] sm:$0xff]
    %v1025 = vld [vmem:[%s2 + $0x88] sm:$0xff]
    %v1026 = vld [vmem:[%s2 + $0x90] sm:$0xff]
    %v1027 = vld [vmem:[%s2 + $0x98] sm:$0xff]
    %v1028 = vld [vmem:[%s2 + $0xa0] sm:$0xff]
    %v1029 = vld [vmem:[%s2 + $0xa8] sm:$0xff]
    %v1030 = vld [vmem:[%s2 + $0xb0] sm:$0xff]
    %v1031 = vld [vmem:[%s2 + $0xb8] sm:$0xff]
    %v1032 = vld [vmem:[%s2 + $0xc0] sm:$0xff]
    %v1033 = vld [vmem:[%s2 + $0xc8] sm:$0xff]
    %v1034 = vld [vmem:[%s2 + $0xd0] sm:$0xff]
    %v1035 = vld [vmem:[%s2 + $0xd8] sm:$0xff]
    %v1036 = vld [vmem:[%s2 + $0xe0] sm:$0xff]
    %v1037 = vld [vmem:[%s2 + $0xe8] sm:$0xff]
    %v1038 = vld [vmem:[%s2 + $0xf0] sm:$0xff]
    %v1039 = vld [vmem:[%s2 + $0xf8] sm:$0xff]
    %1040 = vmatprep.subr.mxu0 0.0
    %1041 = vmatpush1.msra.mxu0 %v1008
    %1042 = vmatprep.subr.mxu0 0.0
    %1043 = vmatpush1.msra.mxu0 %v1009
    %1044 = vmatprep.subr.mxu0 0.0
    %1045 = vmatpush1.msra.mxu0 %v1010
    %1046 = vmatprep.subr.mxu0 0.0
    %1047 = vmatpush1.msra.mxu0 %v1011
    %1048 = vmatprep.subr.mxu0 0.0
    %1049 = vmatpush1.msra.mxu0 %v1012
    %1050 = vmatprep.subr.mxu0 0.0
    %1051 = vmatpush1.msra.mxu0 %v1013
    %1052 = vmatprep.subr.mxu0 0.0
    %1053 = vmatpush1.msra.mxu0 %v1014
    %1054 = vmatprep.subr.mxu0 0.0
    %1055 = vmatpush1.msra.mxu0 %v1015
    %1056 = vmatprep.subr.mxu0 0.0
    %1057 = vmatpush1.msra.mxu0 %v1016
    %1058 = vmatprep.subr.mxu0 0.0
    %1059 = vmatpush1.msra.mxu0 %v1017
    %1060 = vmatprep.subr.mxu0 0.0
    %1061 = vmatpush1.msra.mxu0 %v1018
    %1062 = vmatprep.subr.mxu0 0.0
    %1063 = vmatpush1.msra.mxu0 %v1019
    %1064 = vmatprep.subr.mxu0 0.0
    %1065 = vmatpush1.msra.mxu0 %v1020
    %1066 = vmatprep.subr.mxu0 0.0
    %1067 = vmatpush1.msra.mxu0 %v1021
    %1068 = vmatprep.subr.mxu0 0.0
    %1069 = vmatpush1.msra.mxu0 %v1022
    %1070 = vmatprep.subr.mxu0 0.0
    %1071 = vmatpush1.msra.mxu0 %v1023
    %1072 = vmatprep.subr.mxu0 0.0
    %1073 = vmatpush1.msra.mxu0 %v1024
    %1074 = vmatprep.subr.mxu0 0.0
    %1075 = vmatpush1.msra.mxu0 %v1025
    %1076 = vmatprep.subr.mxu0 0.0
    %1077 = vmatpush1.msra.mxu0 %v1026
    %1078 = vmatprep.subr.mxu0 0.0
    %1079 = vmatpush1.msra.mxu0 %v1027
    %1080 = vmatprep.subr.mxu0 0.0
    %1081 = vmatpush1.msra.mxu0 %v1028
    %1082 = vmatprep.subr.mxu0 0.0
    %1083 = vmatpush1.msra.mxu0 %v1029
    %1084 = vmatprep.subr.mxu0 0.0
    %1085 = vmatpush1.msra.mxu0 %v1030
    %1086 = vmatprep.subr.mxu0 0.0
    %1087 = vmatpush1.msra.mxu0 %v1031
    %1088 = vmatprep.subr.mxu0 0.0
    %1089 = vmatpush1.msra.mxu0 %v1032
    %1090 = vmatprep.subr.mxu0 0.0
    %1091 = vmatpush1.msra.mxu0 %v1033
    %1092 = vmatprep.subr.mxu0 0.0
    %1093 = vmatpush1.msra.mxu0 %v1034
    %1094 = vmatprep.subr.mxu0 0.0
    %1095 = vmatpush1.msra.mxu0 %v1035
    %1096 = vmatprep.subr.mxu0 0.0
    %1097 = vmatpush1.msra.mxu0 %v1036
    %1098 = vmatprep.subr.mxu0 0.0
    %1099 = vmatpush1.msra.mxu0 %v1037
    %1100 = vmatprep.subr.mxu0 0.0
    %1101 = vmatpush1.msra.mxu0 %v1038
    %1102 = vmatprep.subr.mxu0 0.0
    %1103 = vmatpush1.msra.mxu0 %v1039
    %1104 = vmatprep.mubr.f32.mxu0 %v1005
    %1105 = vmatmul.mubr.f32.gmra.mrb[0].mxu0 %v1004
    %v1106 = vpop.f32.mrb[0].mxu0
    %v1107 = vadd.f32 0.0, %v1106
    %v1108 = vpop.f32.mrb[0].mxu0
    %1109 = vdwg.mxu0
    %1110 = vmatprep.subr.mxu0 0.0
    %1111 = vmatpush1.msra.mxu0 %v1008
    %1112 = vmatprep.subr.mxu0 0.0
    %1113 = vmatpush1.msra.mxu0 %v1009
    %1114 = vmatprep.subr.mxu0 0.0
    %1115 = vmatpush1.msra.mxu0 %v1010
    %1116 = vmatprep.subr.mxu0 0.0
    %1117 = vmatpush1.msra.mxu0 %v1011
    %1118 = vmatprep.subr.mxu0 0.0
    %1119 = vmatpush1.msra.mxu0 %v1012
    %1120 = vmatprep.subr.mxu0 0.0
    %1121 = vmatpush1.msra.mxu0 %v1013
    %1122 = vmatprep.subr.mxu0 0.0
    %1123 = vmatpush1.msra.mxu0 %v1014
    %1124 = vmatprep.subr.mxu0 0.0
    %1125 = vmatpush1.msra.mxu0 %v1015
    %1126 = vmatprep.subr.mxu0 0.0
    %1127 = vmatpush1.msra.mxu0 %v1016
    %1128 = vmatprep.subr.mxu0 0.0
    %1129 = vmatpush1.msra.mxu0 %v1017
    %1130 = vmatprep.subr.mxu0 0.0
    %1131 = vmatpush1.msra.mxu0 %v1018
    %1132 = vmatprep.subr.mxu0 0.0
    %1133 = vmatpush1.msra.mxu0 %v1019
    %1134 = vmatprep.subr.mxu0 0.0
    %1135 = vmatpush1.msra.mxu0 %v1020
    %1136 = vmatprep.subr.mxu0 0.0
    %1137 = vmatpush1.msra.mxu0 %v1021
    %1138 = vmatprep.subr.mxu0 0.0
    %1139 = vmatpush1.msra.mxu0 %v1022
    %1140 = vmatprep.subr.mxu0 0.0
    %1141 = vmatpush1.msra.mxu0 %v1023
    %1142 = vmatprep.subr.mxu0 0.0
    %1143 = vmatpush1.msra.mxu0 %v1024
    %1144 = vmatprep.subr.mxu0 0.0
    %1145 = vmatpush1.msra.mxu0 %v1025
    %1146 = vmatprep.subr.mxu0 0.0
    %1147 = vmatpush1.msra.mxu0 %v1026
    %1148 = vmatprep.subr.mxu0 0.0
    %1149 = vmatpush1.msra.mxu0 %v1027
    %1150 = vmatprep.subr.mxu0 0.0
    %1151 = vmatpush1.msra.mxu0 %v1028
    %1152 = vmatprep.subr.mxu0 0.0
    %1153 = vmatpush1.msra.mxu0 %v1029
    %1154 = vmatprep.subr.mxu0 0.0
    %1155 = vmatpush1.msra.mxu0 %v1030
    %1156 = vmatprep.subr.mxu0 0.0
    %1157 = vmatpush1.msra.mxu0 %v1031
    %1158 = vmatprep.subr.mxu0 0.0
    %1159 = vmatpush1.msra.mxu0 %v1032
    %1160 = vmatprep.subr.mxu0 0.0
    %1161 = vmatpush1.msra.mxu0 %v1033
    %1162 = vmatprep.subr.mxu0 0.0
    %1163 = vmatpush1.msra.mxu0 %v1034
    %1164 = vmatprep.subr.mxu0 0.0
    %1165 = vmatpush1.msra.mxu0 %v1035
    %1166 = vmatprep.subr.mxu0 0.0
    %1167 = vmatpush1.msra.mxu0 %v1036
    %1168 = vmatprep.subr.mxu0 0.0
    %1169 = vmatpush1.msra.mxu0 %v1037
    %1170 = vmatprep.subr.mxu0 0.0
    %1171 = vmatpush1.msra.mxu0 %v1038
    %1172 = vmatprep.subr.mxu0 0.0
    %1173 = vmatpush1.msra.mxu0 %v1039
    %1174 = vmatprep.mubr.f32.mxu0 %v1007
    %1175 = vmatmul.mubr.f32.gmra.mrb[0].mxu0 %v1006
    %v1176 = vpop.f32.mrb[0].mxu0
    %v1177 = vadd.f32 0.0, %v1176
    %v1178 = vpop.f32.mrb[0].mxu0
    %1179 = vdwg.mxu0
    %v1180 = vmax.f32 %v1107, 0.0
    %v1181 = vmax.f32 %v1177, 0.0
    %v1182 = vld [vmem:[%s3] sm:$0xff]
    %v1183 = vld [vmem:[%s3 + $0x8] sm:$0xff]
    %v1185 = vsel %vm59, %v1180, 0
    %1187 = vmatprep.subr.mxu0 0.0
    %1188 = vmatpush1.msra.mxu0 %v1182
    %1189 = vmatprep.subr.mxu0 0.0
    %1190 = vmatpush1.msra.mxu0 %v1183
    %1191 = vmatprep.subr.mxu0 0.0
    %1192 = vmatpush1.msra.mxu0 0.0
    %1193 = vmatprep.subr.mxu0 0.0
    %1194 = vmatpush1.msra.mxu0 0.0
    %1195 = vmatprep.subr.mxu0 0.0
    %1196 = vmatpush1.msra.mxu0 0.0
    %1197 = vmatprep.subr.mxu0 0.0
    %1198 = vmatpush1.msra.mxu0 0.0
    %1199 = vmatprep.subr.mxu0 0.0
    %1200 = vmatpush1.msra.mxu0 0.0
    %1201 = vmatprep.subr.mxu0 0.0
    %1202 = vmatpush1.msra.mxu0 0.0
    %1203 = vmatprep.subr.mxu0 0.0
    %1204 = vmatpush1.msra.mxu0 0.0
    %1205 = vmatprep.subr.mxu0 0.0
    %1206 = vmatpush1.msra.mxu0 0.0
    %1207 = vmatprep.subr.mxu0 0.0
    %1208 = vmatpush1.msra.mxu0 0.0
    %1209 = vmatprep.subr.mxu0 0.0
    %1210 = vmatpush1.msra.mxu0 0.0
    %1211 = vmatprep.subr.mxu0 0.0
    %1212 = vmatpush1.msra.mxu0 0.0
    %1213 = vmatprep.subr.mxu0 0.0
    %1214 = vmatpush1.msra.mxu0 0.0
    %1215 = vmatprep.subr.mxu0 0.0
    %1216 = vmatpush1.msra.mxu0 0.0
    %1217 = vmatprep.subr.mxu0 0.0
    %1218 = vmatpush1.msra.mxu0 0.0
    %1219 = vmatprep.subr.mxu0 0.0
    %1220 = vmatpush1.msra.mxu0 0.0
    %1221 = vmatprep.subr.mxu0 0.0
    %1222 = vmatpush1.msra.mxu0 0.0
    %1223 = vmatprep.subr.mxu0 0.0
    %1224 = vmatpush1.msra.mxu0 0.0
    %1225 = vmatprep.subr.mxu0 0.0
    %1226 = vmatpush1.msra.mxu0 0.0
    %1227 = vmatprep.subr.mxu0 0.0
    %1228 = vmatpush1.msra.mxu0 0.0
    %1229 = vmatprep.subr.mxu0 0.0
    %1230 = vmatpush1.msra.mxu0 0.0
    %1231 = vmatprep.subr.mxu0 0.0
    %1232 = vmatpush1.msra.mxu0 0.0
    %1233 = vmatprep.subr.mxu0 0.0
    %1234 = vmatpush1.msra.mxu0 0.0
    %1235 = vmatprep.subr.mxu0 0.0
    %1236 = vmatpush1.msra.mxu0 0.0
    %1237 = vmatprep.subr.mxu0 0.0
    %1238 = vmatpush1.msra.mxu0 0.0
    %1239 = vmatprep.subr.mxu0 0.0
    %1240 = vmatpush1.msra.mxu0 0.0
    %1241 = vmatprep.subr.mxu0 0.0
    %1242 = vmatpush1.msra.mxu0 0.0
    %1243 = vmatprep.subr.mxu0 0.0
    %1244 = vmatpush1.msra.mxu0 0.0
    %1245 = vmatprep.subr.mxu0 0.0
    %1246 = vmatpush1.msra.mxu0 0.0
    %1247 = vmatprep.subr.mxu0 0.0
    %1248 = vmatpush1.msra.mxu0 0.0
    %1249 = vmatprep.subr.mxu0 0.0
    %1250 = vmatpush1.msra.mxu0 0.0
    %1251 = vmatprep.mubr.f32.mxu0 0.0
    %1252 = vmatmul.mubr.f32.gmra.mrb[0].mxu0 %v1185
    %v1253 = vpop.f32.mrb[0].mxu0
    %v1254 = vadd.f32 0.0, %v1253
    %v1255 = vpop.f32.mrb[0].mxu0
    %1256 = vdwg.mxu0
    %v1258 = vsel %vm59, %v1181, 0
    %1260 = vmatprep.subr.mxu0 0.0
    %1261 = vmatpush1.msra.mxu0 %v1182
    %1262 = vmatprep.subr.mxu0 0.0
    %1263 = vmatpush1.msra.mxu0 %v1183
    %1264 = vmatprep.subr.mxu0 0.0
    %1265 = vmatpush1.msra.mxu0 0.0
    %1266 = vmatprep.subr.mxu0 0.0
    %1267 = vmatpush1.msra.mxu0 0.0
    %1268 = vmatprep.subr.mxu0 0.0
    %1269 = vmatpush1.msra.mxu0 0.0
    %1270 = vmatprep.subr.mxu0 0.0
    %1271 = vmatpush1.msra.mxu0 0.0
    %1272 = vmatprep.subr.mxu0 0.0
    %1273 = vmatpush1.msra.mxu0 0.0
    %1274 = vmatprep.subr.mxu0 0.0
    %1275 = vmatpush1.msra.mxu0 0.0
    %1276 = vmatprep.subr.mxu0 0.0
    %1277 = vmatpush1.msra.mxu0 0.0
    %1278 = vmatprep.subr.mxu0 0.0
    %1279 = vmatpush1.msra.mxu0 0.0
    %1280 = vmatprep.subr.mxu0 0.0
    %1281 = vmatpush1.msra.mxu0 0.0
    %1282 = vmatprep.subr.mxu0 0.0
    %1283 = vmatpush1.msra.mxu0 0.0
    %1284 = vmatprep.subr.mxu0 0.0
    %1285 = vmatpush1.msra.mxu0 0.0
    %1286 = vmatprep.subr.mxu0 0.0
    %1287 = vmatpush1.msra.mxu0 0.0
    %1288 = vmatprep.subr.mxu0 0.0
    %1289 = vmatpush1.msra.mxu0 0.0
    %1290 = vmatprep.subr.mxu0 0.0
    %1291 = vmatpush1.msra.mxu0 0.0
    %1292 = vmatprep.subr.mxu0 0.0
    %1293 = vmatpush1.msra.mxu0 0.0
    %1294 = vmatprep.subr.mxu0 0.0
    %1295 = vmatpush1.msra.mxu0 0.0
    %1296 = vmatprep.subr.mxu0 0.0
    %1297 = vmatpush1.msra.mxu0 0.0
    %1298 = vmatprep.subr.mxu0 0.0
    %1299 = vmatpush1.msra.mxu0 0.0
    %1300 = vmatprep.subr.mxu0 0.0
    %1301 = vmatpush1.msra.mxu0 0.0
    %1302 = vmatprep.subr.mxu0 0.0
    %1303 = vmatpush1.msra.mxu0 0.0
    %1304 = vmatprep.subr.mxu0 0.0
    %1305 = vmatpush1.msra.mxu0 0.0
    %1306 = vmatprep.subr.mxu0 0.0
    %1307 = vmatpush1.msra.mxu0 0.0
    %1308 = vmatprep.subr.mxu0 0.0
    %1309 = vmatpush1.msra.mxu0 0.0
    %1310 = vmatprep.subr.mxu0 0.0
    %1311 = vmatpush1.msra.mxu0 0.0
    %1312 = vmatprep.subr.mxu0 0.0
    %1313 = vmatpush1.msra.mxu0 0.0
    %1314 = vmatprep.subr.mxu0 0.0
    %1315 = vmatpush1.msra.mxu0 0.0
    %1316 = vmatprep.subr.mxu0 0.0
    %1317 = vmatpush1.msra.mxu0 0.0
    %1318 = vmatprep.subr.mxu0 0.0
    %1319 = vmatpush1.msra.mxu0 0.0
    %1320 = vmatprep.subr.mxu0 0.0
    %1321 = vmatpush1.msra.mxu0 0.0
    %1322 = vmatprep.subr.mxu0 0.0
    %1323 = vmatpush1.msra.mxu0 0.0
    %1324 = vmatprep.mubr.f32.mxu0 0.0
    %1325 = vmatmul.mubr.f32.gmra.mrb[0].mxu0 %v1258
    %v1326 = vpop.f32.mrb[0].mxu0
    %v1327 = vadd.f32 0.0, %v1326
    %v1328 = vpop.f32.mrb[0].mxu0
    %1329 = vdwg.mxu0
    %v1330 = vxor.u32 %v1254, 2147483648
    %v1331 = vxor.u32 %v1327, 2147483648
    %v1332 = vmul.f32 %v1330, 1.442695
    %v1333 = vpow.pop %v1332
    %v1334 = vmul.f32 %v1331, 1.442695
    %v1335 = vpow.pop %v1334
    %v1336 = vadd.f32 %v1333, 1.0
    %v1337 = vadd.f32 %v1335, 1.0
    %v1338 = vrcp.pop %v1336
    %v1339 = vmul.f32 1.0, %v1338
    %v1340 = vrcp.pop %v1337
    %v1341 = vmul.f32 1.0, %v1340
    %v1342 = vld [vmem:[%s6] sm:$0xff]
    %v1343 = vld [vmem:[%s6 + $0x8] sm:$0xff]
    %1345 = vset.pattern.permute.xlu0 0
    %1346 = vperm.xlu0 %1345, %v1342
    %v1347 = vpop.permute.xlu0 %1346
    %1350 = vset.pattern.permute.xlu0 0
    %1351 = vperm.xlu0 %1350, %v1343
    %v1352 = vpop.permute.xlu0 %1351
    %v1354 = vlaneseq
    %v1355 = vshrl.u32 %v1354, 7
    %v1356 = vsub.s32 0, %v1355
    %v1357 = vrot.slane %v1339, %v1356
    %v1358 = vlaneseq
    %v1359 = vshrl.u32 %v1358, 7
    %v1360 = vsub.s32 0, %v1359
    %v1361 = vrot.slane %v1341, %v1360
    %v1362 = vmul.f32 %v1347, %v1357
    %v1363 = vmul.f32 %v1352, %v1357
    %v1364 = vmul.f32 %v1347, %v1361
    %v1365 = vmul.f32 %v1352, %v1361
    %1366 = vset.pattern.permute.xlu0 1
    %1367 = vperm.xlu0 %1366, %v1342
    %v1368 = vpop.permute.xlu0 %1367
    %1370 = vset.pattern.permute.xlu0 1
    %1371 = vperm.xlu0 %1370, %v1343
    %v1372 = vpop.permute.xlu0 %1371
    %v1374 = vmul.f32 %v1368, %v1357
    %v1375 = vmul.f32 %v1372, %v1357
    %v1376 = vmul.f32 %v1368, %v1361
    %v1377 = vmul.f32 %v1372, %v1361
    %1382 = vrot.lane.b32.xlu0 %v1374, 124
    %v1383 = vpop.permute.xlu0 %1382
    %1384 = vrot.lane.b32.xlu0 %v1375, 124
    %v1385 = vpop.permute.xlu0 %1384
    %1386 = vrot.lane.b32.xlu0 %v1376, 124
    %v1387 = vpop.permute.xlu0 %1386
    %1388 = vrot.lane.b32.xlu0 %v1377, 124
    %v1389 = vpop.permute.xlu0 %1388
    %v1394 = vadd.f32 %v1362, %v1383
    %v1395 = vadd.f32 %v1363, %v1385
    %v1396 = vadd.f32 %v1364, %v1387
    %v1397 = vadd.f32 %v1365, %v1389
    %1398 = vset.pattern.permute.xlu0 2
    %1399 = vperm.xlu0 %1398, %v1342
    %v1400 = vpop.permute.xlu0 %1399
    %1402 = vset.pattern.permute.xlu0 2
    %1403 = vperm.xlu0 %1402, %v1343
    %v1404 = vpop.permute.xlu0 %1403
    %v1406 = vmul.f32 %v1400, %v1357
    %v1407 = vmul.f32 %v1404, %v1357
    %v1408 = vmul.f32 %v1400, %v1361
    %v1409 = vmul.f32 %v1404, %v1361
    %1414 = vrot.lane.b32.xlu0 %v1406, 120
    %v1415 = vpop.permute.xlu0 %1414
    %1416 = vrot.lane.b32.xlu0 %v1407, 120
    %v1417 = vpop.permute.xlu0 %1416
    %1418 = vrot.lane.b32.xlu0 %v1408, 120
    %v1419 = vpop.permute.xlu0 %1418
    %1420 = vrot.lane.b32.xlu0 %v1409, 120
    %v1421 = vpop.permute.xlu0 %1420
    %v1426 = vadd.f32 %v1394, %v1415
    %v1427 = vadd.f32 %v1395, %v1417
    %v1428 = vadd.f32 %v1396, %v1419
    %v1429 = vadd.f32 %v1397, %v1421
    %1430 = vset.pattern.permute.xlu0 3
    %1431 = vperm.xlu0 %1430, %v1342
    %v1432 = vpop.permute.xlu0 %1431
    %1434 = vset.pattern.permute.xlu0 3
    %1435 = vperm.xlu0 %1434, %v1343
    %v1436 = vpop.permute.xlu0 %1435
    %v1438 = vmul.f32 %v1432, %v1357
    %v1439 = vmul.f32 %v1436, %v1357
    %v1440 = vmul.f32 %v1432, %v1361
    %v1441 = vmul.f32 %v1436, %v1361
    %1446 = vrot.lane.b32.xlu0 %v1438, 116
    %v1447 = vpop.permute.xlu0 %1446
    %1448 = vrot.lane.b32.xlu0 %v1439, 116
    %v1449 = vpop.permute.xlu0 %1448
    %1450 = vrot.lane.b32.xlu0 %v1440, 116
    %v1451 = vpop.permute.xlu0 %1450
    %1452 = vrot.lane.b32.xlu0 %v1441, 116
    %v1453 = vpop.permute.xlu0 %1452
    %v1458 = vadd.f32 %v1426, %v1447
    %v1459 = vadd.f32 %v1427, %v1449
    %v1460 = vadd.f32 %v1428, %v1451
    %v1461 = vadd.f32 %v1429, %v1453
    %v1462 = vld [vmem:[%s7] sm:$0xf]
    %v1464 = vsel %vm376, %v1458, 0
    %v1467 = vsel %vm376, %v1459, 0
    %v1470 = vsel %vm379, %v1462, 0
    %1472 = vmatprep.subr.mxu0 0.0
    %1473 = vmatpush1.msra.mxu0 %v1470
    %1474 = vmatprep.subr.mxu0 0.0
    %1475 = vmatpush1.msra.mxu0 0.0
    %1476 = vmatprep.subr.mxu0 0.0
    %1477 = vmatpush1.msra.mxu0 0.0
    %1478 = vmatprep.subr.mxu0 0.0
    %1479 = vmatpush1.msra.mxu0 0.0
    %1480 = vmatprep.subr.mxu0 0.0
    %1481 = vmatpush1.msra.mxu0 0.0
    %1482 = vmatprep.subr.mxu0 0.0
    %1483 = vmatpush1.msra.mxu0 0.0
    %1484 = vmatprep.subr.mxu0 0.0
    %1485 = vmatpush1.msra.mxu0 0.0
    %1486 = vmatprep.subr.mxu0 0.0
    %1487 = vmatpush1.msra.mxu0 0.0
    %1488 = vmatprep.subr.mxu0 0.0
    %1489 = vmatpush1.msra.mxu0 0.0
    %1490 = vmatprep.subr.mxu0 0.0
    %1491 = vmatpush1.msra.mxu0 0.0
    %1492 = vmatprep.subr.mxu0 0.0
    %1493 = vmatpush1.msra.mxu0 0.0
    %1494 = vmatprep.subr.mxu0 0.0
    %1495 = vmatpush1.msra.mxu0 0.0
    %1496 = vmatprep.subr.mxu0 0.0
    %1497 = vmatpush1.msra.mxu0 0.0
    %1498 = vmatprep.subr.mxu0 0.0
    %1499 = vmatpush1.msra.mxu0 0.0
    %1500 = vmatprep.subr.mxu0 0.0
    %1501 = vmatpush1.msra.mxu0 0.0
    %1502 = vmatprep.subr.mxu0 0.0
    %1503 = vmatpush1.msra.mxu0 0.0
    %1504 = vmatprep.subr.mxu0 0.0
    %1505 = vmatpush1.msra.mxu0 0.0
    %1506 = vmatprep.subr.mxu0 0.0
    %1507 = vmatpush1.msra.mxu0 0.0
    %1508 = vmatprep.subr.mxu0 0.0
    %1509 = vmatpush1.msra.mxu0 0.0
    %1510 = vmatprep.subr.mxu0 0.0
    %1511 = vmatpush1.msra.mxu0 0.0
    %1512 = vmatprep.subr.mxu0 0.0
    %1513 = vmatpush1.msra.mxu0 0.0
    %1514 = vmatprep.subr.mxu0 0.0
    %1515 = vmatpush1.msra.mxu0 0.0
    %1516 = vmatprep.subr.mxu0 0.0
    %1517 = vmatpush1.msra.mxu0 0.0
    %1518 = vmatprep.subr.mxu0 0.0
    %1519 = vmatpush1.msra.mxu0 0.0
    %1520 = vmatprep.subr.mxu0 0.0
    %1521 = vmatpush1.msra.mxu0 0.0
    %1522 = vmatprep.subr.mxu0 0.0
    %1523 = vmatpush1.msra.mxu0 0.0
    %1524 = vmatprep.subr.mxu0 0.0
    %1525 = vmatpush1.msra.mxu0 0.0
    %1526 = vmatprep.subr.mxu0 0.0
    %1527 = vmatpush1.msra.mxu0 0.0
    %1528 = vmatprep.subr.mxu0 0.0
    %1529 = vmatpush1.msra.mxu0 0.0
    %1530 = vmatprep.subr.mxu0 0.0
    %1531 = vmatpush1.msra.mxu0 0.0
    %1532 = vmatprep.subr.mxu0 0.0
    %1533 = vmatpush1.msra.mxu0 0.0
    %1534 = vmatprep.subr.mxu0 0.0
    %1535 = vmatpush1.msra.mxu0 0.0
    %1536 = vmatprep.mubr.f32.mxu0 0.0
    %1537 = vmatmul.mubr.f32.gmra.mrb[0].mxu0 %v1464
    %v1538 = vpop.f32.mrb[0].mxu0
    %v1539 = vadd.f32 0.0, %v1538
    %v1540 = vpop.f32.mrb[0].mxu0
    %1541 = vmatprep.mubr.f32.mxu0 0.0
    %1542 = vmatmul.mubr.f32.gmra.mrb[0].mxu0 %v1467
    %v1543 = vpop.f32.mrb[0].mxu0
    %v1544 = vadd.f32 0.0, %v1543
    %v1545 = vpop.f32.mrb[0].mxu0
    %1546 = vdwg.mxu0
    %v1548 = vsel %vm376, %v1460, 0
    %v1551 = vsel %vm376, %v1461, 0
    %1553 = vmatprep.subr.mxu0 0.0
    %1554 = vmatpush1.msra.mxu0 %v1470
    %1555 = vmatprep.subr.mxu0 0.0
    %1556 = vmatpush1.msra.mxu0 0.0
    %1557 = vmatprep.subr.mxu0 0.0
    %1558 = vmatpush1.msra.mxu0 0.0
    %1559 = vmatprep.subr.mxu0 0.0
    %1560 = vmatpush1.msra.mxu0 0.0
    %1561 = vmatprep.subr.mxu0 0.0
    %1562 = vmatpush1.msra.mxu0 0.0
    %1563 = vmatprep.subr.mxu0 0.0
    %1564 = vmatpush1.msra.mxu0 0.0
    %1565 = vmatprep.subr.mxu0 0.0
    %1566 = vmatpush1.msra.mxu0 0.0
    %1567 = vmatprep.subr.mxu0 0.0
    %1568 = vmatpush1.msra.mxu0 0.0
    %1569 = vmatprep.subr.mxu0 0.0
    %1570 = vmatpush1.msra.mxu0 0.0
    %1571 = vmatprep.subr.mxu0 0.0
    %1572 = vmatpush1.msra.mxu0 0.0
    %1573 = vmatprep.subr.mxu0 0.0
    %1574 = vmatpush1.msra.mxu0 0.0
    %1575 = vmatprep.subr.mxu0 0.0
    %1576 = vmatpush1.msra.mxu0 0.0
    %1577 = vmatprep.subr.mxu0 0.0
    %1578 = vmatpush1.msra.mxu0 0.0
    %1579 = vmatprep.subr.mxu0 0.0
    %1580 = vmatpush1.msra.mxu0 0.0
    %1581 = vmatprep.subr.mxu0 0.0
    %1582 = vmatpush1.msra.mxu0 0.0
    %1583 = vmatprep.subr.mxu0 0.0
    %1584 = vmatpush1.msra.mxu0 0.0
    %1585 = vmatprep.subr.mxu0 0.0
    %1586 = vmatpush1.msra.mxu0 0.0
    %1587 = vmatprep.subr.mxu0 0.0
    %1588 = vmatpush1.msra.mxu0 0.0
    %1589 = vmatprep.subr.mxu0 0.0
    %1590 = vmatpush1.msra.mxu0 0.0
    %1591 = vmatprep.subr.mxu0 0.0
    %1592 = vmatpush1.msra.mxu0 0.0
    %1593 = vmatprep.subr.mxu0 0.0
    %1594 = vmatpush1.msra.mxu0 0.0
    %1595 = vmatprep.subr.mxu0 0.0
    %1596 = vmatpush1.msra.mxu0 0.0
    %1597 = vmatprep.subr.mxu0 0.0
    %1598 = vmatpush1.msra.mxu0 0.0
    %1599 = vmatprep.subr.mxu0 0.0
    %1600 = vmatpush1.msra.mxu0 0.0
    %1601 = vmatprep.subr.mxu0 0.0
    %1602 = vmatpush1.msra.mxu0 0.0
    %1603 = vmatprep.subr.mxu0 0.0
    %1604 = vmatpush1.msra.mxu0 0.0
    %1605 = vmatprep.subr.mxu0 0.0
    %1606 = vmatpush1.msra.mxu0 0.0
    %1607 = vmatprep.subr.mxu0 0.0
    %1608 = vmatpush1.msra.mxu0 0.0
    %1609 = vmatprep.subr.mxu0 0.0
    %1610 = vmatpush1.msra.mxu0 0.0
    %1611 = vmatprep.subr.mxu0 0.0
    %1612 = vmatpush1.msra.mxu0 0.0
    %1613 = vmatprep.subr.mxu0 0.0
    %1614 = vmatpush1.msra.mxu0 0.0
    %1615 = vmatprep.subr.mxu0 0.0
    %1616 = vmatpush1.msra.mxu0 0.0
    %1617 = vmatprep.mubr.f32.mxu0 0.0
    %1618 = vmatmul.mubr.f32.gmra.mrb[0].mxu0 %v1548
    %v1619 = vpop.f32.mrb[0].mxu0
    %v1620 = vadd.f32 0.0, %v1619
    %v1621 = vpop.f32.mrb[0].mxu0
    %1622 = vmatprep.mubr.f32.mxu0 0.0
    %1623 = vmatmul.mubr.f32.gmra.mrb[0].mxu0 %v1551
    %v1624 = vpop.f32.mrb[0].mxu0
    %v1625 = vadd.f32 0.0, %v1624
    %v1626 = vpop.f32.mrb[0].mxu0
    %1627 = vdwg.mxu0
    %1628 = vst.msk [vmem:[#allocation4] sm:$0xff] %vm59, %v1539
    %1629 = vst.msk [vmem:[#allocation4 + $0x8] sm:$0xff] %vm59, %v1544
    %1630 = vst.msk [vmem:[#allocation4 + $0x10] sm:$0xff] %vm59, %v1620
    %1631 = vst.msk [vmem:[#allocation4 + $0x18] sm:$0xff] %vm59, %v1625
    %v1632 = vmul.f32 %v33, %v1539
    %v1633 = vmul.f32 %v34, %v1544
    %v1634 = vmul.f32 %v35, %v1539
    %v1635 = vmul.f32 %v36, %v1544
    %v1636 = vmul.f32 %v37, %v1539
    %v1637 = vmul.f32 %v38, %v1544
    %v1638 = vmul.f32 %v39, %v1620
    %v1639 = vmul.f32 %v40, %v1625
    %v1640 = vmul.f32 %v41, %v1620
    %v1641 = vmul.f32 %v42, %v1625
    %v1642 = vmul.f32 %v43, %v1620
    %v1643 = vmul.f32 %v44, %v1625
    %1644 = vst.msk [vmem:[#allocation2] sm:$0xff] %vm59, %v1632
    %1645 = vst.msk [vmem:[#allocation2 + $0x8] sm:$0xff] %vm59, %v1633
    %1646 = vst.msk [vmem:[#allocation2 + $0x10] sm:$0xff] %vm59, %v1634
    %1647 = vst.msk [vmem:[#allocation2 + $0x18] sm:$0xff] %vm59, %v1635
    %1648 = vst.msk [vmem:[#allocation2 + $0x20] sm:$0xff] %vm59, %v1636
    %1649 = vst.msk [vmem:[#allocation2 + $0x28] sm:$0xff] %vm59, %v1637
    %1650 = vst.msk [vmem:[#allocation2 + $0x30] sm:$0xff] %vm59, %v1638
    %1651 = vst.msk [vmem:[#allocation2 + $0x38] sm:$0xff] %vm59, %v1639
    %1652 = vst.msk [vmem:[#allocation2 + $0x40] sm:$0xff] %vm59, %v1640
    %1653 = vst.msk [vmem:[#allocation2 + $0x48] sm:$0xff] %vm59, %v1641
    %1654 = vst.msk [vmem:[#allocation2 + $0x50] sm:$0xff] %vm59, %v1642
    %1655 = vst.msk [vmem:[#allocation2 + $0x58] sm:$0xff] %vm59, %v1643
    // Predicated region
    $region34: #{tpu_custom_call.1} parent=1 // pred_check
      _
    $region35: #{tpu_custom_call.1} parent=1 // pred_check_branch
      %1657 = sbr.rel (0) target = $region37
    $region36: #{tpu_custom_call.1} parent=1 // pred_region
      %s1659 = ssub.s32 1536, 1536
      %1660 = vsyncadd [#allocation3], %s1659
      %s1661 = sshll.u32 [#allocation2], 4
      %s1662 = int_to_ptr.vmem [resolvable:$true] %s1661
      %1667 = dma.vmem_to_hbm [thread:$0]  %s1662, 1536, %s8, [#allocation3], 128, 128, 8
    $region37: #{tpu_custom_call.1} parent=1 // pred_fallthru
      _
    // Predicated region
    $region38: #{tpu_custom_call.1} parent=1 // pred_check
      _
    $region39: #{tpu_custom_call.1} parent=1 // pred_check_branch
      %1669 = sbr.rel (0) target = $region41
    $region40: #{tpu_custom_call.1} parent=1 // pred_region
      %s1671 = ssub.s32 512, 512
      %1672 = vsyncadd [#allocation5], %s1671
      %s1673 = sshll.u32 [#allocation4], 4
      %s1674 = int_to_ptr.vmem [resolvable:$true] %s1673
      %1679 = dma.vmem_to_hbm [thread:$0]  %s1674, 512, %s9, [#allocation5], 128, 128, 8
    $region41: #{tpu_custom_call.1} parent=1 // pred_fallthru
      _
    // Predicated region
    $region42: #{tpu_custom_call.1} parent=1 // pred_check
      _
    $region43: #{tpu_custom_call.1} parent=1 // pred_check_branch
      %1681 = sbr.rel (0) target = $region45
    $region44: #{tpu_custom_call.1} parent=1 // pred_region
      %1682 = dma.done [#allocation3], 1536
    $region45: #{tpu_custom_call.1} parent=1 // pred_fallthru
      _
    // Predicated region
    $region46: #{tpu_custom_call.1} parent=1 // pred_check
      _
    $region47: #{tpu_custom_call.1} parent=1 // pred_check_branch
      %1684 = sbr.rel (0) target = $region49
    $region48: #{tpu_custom_call.1} parent=1 // pred_region
      %1685 = dma.done [#allocation5], 512
    $region49: #{tpu_custom_call.1} parent=1 // pred_fallthru
      _
    %1686 = vsyncpa [#allocation3], 1
    %1687 = vsyncpa [#allocation5], 1

</llo_original>
